<compile_context>
chip_gen: v7x
topology: tpu7x:2x2x1
jax: 0.10.0
libtpu: 0.0.40
codegen_flags: <defaults>
</compile_context>

<pallas_src>
import functools

import jax
import jax.numpy as jnp
from jax import lax
from jax.experimental import pallas as pl
from jax.experimental.pallas import tpu as pltpu


INPUT_SIZE = 16
HIDDEN = 32
OUTPUT_SIZE = 8
NUM_LAYERS = 2
ARCHITECTURE = [INPUT_SIZE] + [HIDDEN] * NUM_LAYERS + [OUTPUT_SIZE]

_LANE = 256          # batch-tile granularity (multiple of 256 fills a v6e/v7x MXU pass)
_DEFAULT_TB = 2048   # batch (lane) tile; 2 bufs * (TB*16*4B + TB*8*2B) ~= 0.4 MiB
_CHUNK = 256         # in-kernel sub-slab: keeps live f32 intermediates ~8-16 vregs

# dot_general dimension numbers (MXU-native transposed-operand forms used by
# the flash/splash attention kernels):
_NT = (((1,), (1,)), ((), ()))   # A @ B.T   (contract both on their last dim)
_TN = (((0,), (0,)), ((), ()))   # A.T @ B   (contract both on their first dim)


def _mlp_kernel(x_ref, w0_ref, b0_ref, w1_ref, b1_ref, w2t_ref, b2_ref, o_ref):
    """Fused 3-layer MLP on a (TB, 16) natural-layout input slab.

    Per 256-lane chunk: layer-0 puts the batch on the lane axis via an NT
    dot_general (h0_T = w0 @ x.T, shape (32, chunk) -> lane-dense), layer-1 is a
    plain dot, and layer-2 returns to natural layout via a TN dot_general
    (y = h1_T.T @ w2.T, shape (chunk, 8)) so the output is stored directly in
    (batch, 8) layout. Dot inputs are bf16, accumulation and elementwise math
    (bias add, relu, tanh) are f32.
    """
    w0 = w0_ref[...]     # (32, 16) bf16
    b0 = b0_ref[...]     # (32, 1)  f32
    w1 = w1_ref[...]     # (32, 32) bf16
    b1 = b1_ref[...]     # (32, 1)  f32
    w2t = w2t_ref[...]   # (32, 8)  bf16  (= w2.T)
    b2 = b2_ref[...]     # (1, 8)   f32

    n_chunks = x_ref.shape[0] // _CHUNK

    def body(c, carry):
        off = pl.multiple_of(c * _CHUNK, _CHUNK)
        x = x_ref[pl.ds(off, _CHUNK), :].astype(jnp.bfloat16)        # (C, 16)

        # layer 0: Linear(16 -> 32) + ReLU, transposed (lane-dense) activations
        h = lax.dot_general(w0, x, _NT, preferred_element_type=jnp.float32)  # (32, C)
        h = jnp.maximum(h + b0, 0.0)

        # layer 1: Linear(32 -> 32) + ReLU
        h = jnp.dot(w1, h.astype(jnp.bfloat16),
                    preferred_element_type=jnp.float32)               # (32, C)
        h = jnp.maximum(h + b1, 0.0)

        # layer 2: Linear(32 -> 8) + Tanh, back to natural (batch, out) layout
        y = lax.dot_general(h.astype(jnp.bfloat16), w2t, _TN,
                            preferred_element_type=jnp.float32)       # (C, 8)
        o_ref[pl.ds(off, _CHUNK), :] = jnp.tanh(y + b2).astype(o_ref.dtype)
        return carry

    lax.fori_loop(0, n_chunks, body, 0, unroll=True)


def _round_up(x, m):
    return ((x + m - 1) // m) * m


@functools.partial(jax.jit, static_argnames=("block_batch", "out_dtype"))
def neural_net_forward(x, params, *, block_batch=_DEFAULT_TB, out_dtype=jnp.bfloat16):
    """Fused MLP forward.

    x:      (batch, INPUT_SIZE) float32 (natural layout, consumed as-is)
    params: (w0, b0, w1, b1, w2, b2) in PyTorch layout:
            wi of shape (out_i, in_i), bi of shape (out_i,), all float32.
    Returns (batch, OUTPUT_SIZE) in out_dtype (default bf16: tanh output is
    bounded, halves the HBM write; pass jnp.float32 for full-width output).
    """
    w0, b0, w1, b1, w2, b2 = params
    batch, in_dim = x.shape
    out_dim = w2.shape[0]

    # Batch tile: multiple of 256 lanes, capped at block_batch, and sized so that
    # there are >= 2 tiles whenever the batch allows it (so the "parallel" grid
    # axis can be split across v7x's two TensorCores).
    lane_padded = _round_up(batch, _LANE)
    tb = min(block_batch, max(_LANE, _round_up(lane_padded // 2, _LANE)))
    assert tb % _CHUNK == 0
    padded = _round_up(batch, tb)
    grid = (padded // tb,)

    # Only pad (zeros) when the batch isn't tile-aligned; no cast / no transpose
    # passes over x in the wrapper — layout work happens in-kernel.
    if padded != batch:
        x = jnp.pad(x, ((0, padded - batch), (0, 0)))

    # Tiny, one-off parameter reshapes/casts (a few KiB total).
    w0b = w0.astype(jnp.bfloat16)
    w1b = w1.astype(jnp.bfloat16)
    w2t = w2.T.astype(jnp.bfloat16)                       # (32, 8)
    b0c = b0.reshape(-1, 1).astype(jnp.float32)           # (32, 1)
    b1c = b1.reshape(-1, 1).astype(jnp.float32)           # (32, 1)
    b2c = b2.reshape(1, -1).astype(jnp.float32)           # (1, 8)

    def resident(shape):
        # Whole-array VMEM block, constant block index -> DMA'd once, stays
        # resident across all batch tiles (Pallas skips repeated DMAs).
        return pl.BlockSpec(shape, lambda i: (0,) * len(shape))

    flops = 2 * padded * sum(a * b for a, b in zip(ARCHITECTURE[:-1], ARCHITECTURE[1:]))
    out_itemsize = jnp.dtype(out_dtype).itemsize
    bytes_accessed = (padded * in_dim * 4 + padded * out_dim * out_itemsize
                      + sum(w.size * 2 for w in (w0b, w1b, w2t))
                      + sum(b.size * 4 for b in (b0c, b1c, b2c)))

    out = pl.pallas_call(
        _mlp_kernel,
        out_shape=jax.ShapeDtypeStruct((padded, out_dim), out_dtype),
        grid=grid,
        in_specs=[
            pl.BlockSpec((tb, in_dim), lambda i: (i, 0)),   # x streams over batch tiles
            resident(w0b.shape), resident(b0c.shape),
            resident(w1b.shape), resident(b1c.shape),
            resident(w2t.shape), resident(b2c.shape),
        ],
        out_specs=pl.BlockSpec((tb, out_dim), lambda i: (i, 0)),
        compiler_params=pltpu.CompilerParams(
            dimension_semantics=("parallel",),   # shard batch tiles across v7x's 2 TCs
        ),
        cost_estimate=pl.CostEstimate(
            flops=flops,
            transcendentals=padded * out_dim,    # final tanh
            bytes_accessed=bytes_accessed,
        ),
    )(x, w0b, b0c, w1b, b1c, w2t, b2c)

    # Padded batch rows produce garbage (bias+relu+tanh of zeros); slice them off.
    return out[:batch]


# -----------------------------------------------------------------------------
# Deterministic synthetic parameters (PyTorch nn.Linear layout):
#   weight (out, in) ~ U[-1/sqrt(fan_in), 1/sqrt(fan_in)]
#   bias   (out,)    ~ U[0, 1)      (matches biases config 'default')
# -----------------------------------------------------------------------------
def init_params(key, architecture):
    params = []
    for i in range(len(architecture) - 1):
        fan_in, fan_out = architecture[i], architecture[i + 1]
        key, kw, kb = jax.random.split(key, 3)
        bound = 1.0 / (fan_in ** 0.5)
        w = jax.random.uniform(kw, (fan_out, fan_in), jnp.float32, -bound, bound)
        b = jax.random.uniform(kb, (fan_out,), jnp.float32, 0.0, 1.0)
        params += [w, b]
    return tuple(params)


def reference_forward(x, params):
    """Plain-JAX f32 reference matching NeuralNet.forward for this config."""
    w0, b0, w1, b1, w2, b2 = params
    h = jnp.maximum(x @ w0.T + b0, 0.0)
    h = jnp.maximum(h @ w1.T + b1, 0.0)
    return jnp.tanh(h @ w2.T + b2)


if __name__ == "__main__":
    key = jax.random.PRNGKey(0)
    key, kx = jax.random.split(key)
    # 1000 rows: small (64 KiB of input) but exercises 2 parallel grid tiles,
    # the zero-padding path (1000 -> 1024) and the final un-pad slice.
    batch = 1000
    x = jax.random.normal(kx, (batch, INPUT_SIZE), jnp.float32)
    params = init_params(key, ARCHITECTURE)

    out = neural_net_forward(x, params)
    out = jax.block_until_ready(out)

    ref = reference_forward(x, params)
    assert out.shape == (batch, OUTPUT_SIZE)
    # bf16 MXU inputs / bf16 output with f32 accumulation -> loosened tolerance
    # vs the pure-f32 reference.
    assert jnp.allclose(out.astype(jnp.float32), ref, atol=5e-2, rtol=5e-2), \
        "mismatch vs reference"

    print("KERNEL_OK")
</pallas_src>

<mosaic_0001>
module attributes {stable_mosaic.version = 11 : i64} {
  func.func @_mlp_kernel(%arg0: i32, %arg1: memref<512x16xf32, #tpu.memory_space<vmem>>, %arg2: memref<32x16xbf16, #tpu.memory_space<vmem>>, %arg3: memref<32x1xf32, #tpu.memory_space<vmem>>, %arg4: memref<32x32xbf16, #tpu.memory_space<vmem>>, %arg5: memref<32x1xf32, #tpu.memory_space<vmem>>, %arg6: memref<32x8xbf16, #tpu.memory_space<vmem>>, %arg7: memref<1x8xf32, #tpu.memory_space<vmem>>, %arg8: memref<512x8xbf16, #tpu.memory_space<vmem>>) attributes {dimension_semantics = [#tpu.dimension_semantics<parallel>], iteration_bounds = array<i64: 2>, scalar_prefetch = 0 : i64, scratch_operands = 0 : i64, tpu.core_type = #tpu.core_type<tc>, window_params = [{transform_indices = @transform_0, window_bounds = array<i64: 512, 16>}, {pipeline_mode = #tpu.pipeline_mode<synchronous>, transform_indices = @transform_1, window_bounds = array<i64: 32, 16>}, {pipeline_mode = #tpu.pipeline_mode<synchronous>, transform_indices = @transform_2, window_bounds = array<i64: 32, 1>}, {pipeline_mode = #tpu.pipeline_mode<synchronous>, transform_indices = @transform_3, window_bounds = array<i64: 32, 32>}, {pipeline_mode = #tpu.pipeline_mode<synchronous>, transform_indices = @transform_4, window_bounds = array<i64: 32, 1>}, {pipeline_mode = #tpu.pipeline_mode<synchronous>, transform_indices = @transform_5, window_bounds = array<i64: 32, 8>}, {pipeline_mode = #tpu.pipeline_mode<synchronous>, transform_indices = @transform_6, window_bounds = array<i64: 1, 8>}, {transform_indices = @transform_7, window_bounds = array<i64: 512, 8>}]} {
    %c0 = arith.constant 0 : index
    %c0_0 = arith.constant 0 : index
    %0 = vector.load %arg2[%c0, %c0_0] : memref<32x16xbf16, #tpu.memory_space<vmem>>, vector<32x16xbf16>
    %c0_1 = arith.constant 0 : index
    %c0_2 = arith.constant 0 : index
    %1 = vector.load %arg3[%c0_1, %c0_2] : memref<32x1xf32, #tpu.memory_space<vmem>>, vector<32x1xf32>
    %c0_3 = arith.constant 0 : index
    %c0_4 = arith.constant 0 : index
    %2 = vector.load %arg4[%c0_3, %c0_4] : memref<32x32xbf16, #tpu.memory_space<vmem>>, vector<32x32xbf16>
    %c0_5 = arith.constant 0 : index
    %c0_6 = arith.constant 0 : index
    %3 = vector.load %arg5[%c0_5, %c0_6] : memref<32x1xf32, #tpu.memory_space<vmem>>, vector<32x1xf32>
    %c0_7 = arith.constant 0 : index
    %c0_8 = arith.constant 0 : index
    %4 = vector.load %arg6[%c0_7, %c0_8] : memref<32x8xbf16, #tpu.memory_space<vmem>>, vector<32x8xbf16>
    %c0_9 = arith.constant 0 : index
    %c0_10 = arith.constant 0 : index
    %5 = vector.load %arg7[%c0_9, %c0_10] : memref<1x8xf32, #tpu.memory_space<vmem>>, vector<1x8xf32>
    %c0_i32 = arith.constant 0 : i32
    %c256_i32 = arith.constant 256 : i32
    %6 = arith.muli %c0_i32, %c256_i32 : i32
    %7 = tpu.assume_multiple %6, 256 : i32
    %8 = arith.index_cast %7 : i32 to index
    %c0_11 = arith.constant 0 : index
    %9 = vector.load %arg1[%8, %c0_11] : memref<512x16xf32, #tpu.memory_space<vmem>>, vector<256x16xf32>
    %10 = arith.truncf %9 : vector<256x16xf32> to vector<256x16xbf16>
    %cst = arith.constant dense<0.000000e+00> : vector<32x256xf32>
    %11 = tpu.matmul %0, %10, %cst {dimension_numbers = #tpu.dot_dimension_numbers<[1], [1], [0], [0], [0, 0, 1, 0], [], []>} : vector<32x16xbf16>, vector<256x16xbf16>, vector<32x256xf32> -> vector<32x256xf32>
    %12 = vector.broadcast %1 : vector<32x1xf32> to vector<32x256xf32>
    %13 = arith.addf %11, %12 : vector<32x256xf32>
    %cst_12 = arith.constant 0.000000e+00 : f32
    %14 = vector.broadcast %cst_12 : f32 to vector<32x256xf32>
    %15 = arith.maximumf %13, %14 : vector<32x256xf32>
    %16 = arith.truncf %15 : vector<32x256xf32> to vector<32x256xbf16>
    %cst_13 = arith.constant dense<0.000000e+00> : vector<32x256xf32>
    %17 = tpu.matmul %2, %16, %cst_13 {dimension_numbers = #tpu.dot_dimension_numbers<[1], [0], [0], [1], [0, 0, 1, 1], [], []>} : vector<32x32xbf16>, vector<32x256xbf16>, vector<32x256xf32> -> vector<32x256xf32>
    %18 = vector.broadcast %3 : vector<32x1xf32> to vector<32x256xf32>
    %19 = arith.addf %17, %18 : vector<32x256xf32>
    %cst_14 = arith.constant 0.000000e+00 : f32
    %20 = vector.broadcast %cst_14 : f32 to vector<32x256xf32>
    %21 = arith.maximumf %19, %20 : vector<32x256xf32>
    %22 = arith.truncf %21 : vector<32x256xf32> to vector<32x256xbf16>
    %cst_15 = arith.constant dense<0.000000e+00> : vector<256x8xf32>
    %23 = tpu.matmul %22, %4, %cst_15 {dimension_numbers = #tpu.dot_dimension_numbers<[0], [0], [1], [1], [0, 1, 1, 1], [], []>} : vector<32x256xbf16>, vector<32x8xbf16>, vector<256x8xf32> -> vector<256x8xf32>
    %24 = vector.broadcast %5 : vector<1x8xf32> to vector<256x8xf32>
    %25 = arith.addf %23, %24 : vector<256x8xf32>
    %26 = math.tanh %25 : vector<256x8xf32>
    %27 = arith.truncf %26 : vector<256x8xf32> to vector<256x8xbf16>
    %28 = arith.index_cast %7 : i32 to index
    %c0_16 = arith.constant 0 : index
    %29 = vector.load %arg8[%28, %c0_16] : memref<512x8xbf16, #tpu.memory_space<vmem>>, vector<256x8xbf16>
    tpu.vector_store %arg8[%28, %c0_16], %27 {strides = array<i32>} : memref<512x8xbf16, #tpu.memory_space<vmem>>, vector<256x8xbf16>,
    %c1_i32 = arith.constant 1 : i32
    %c256_i32_17 = arith.constant 256 : i32
    %30 = arith.muli %c1_i32, %c256_i32_17 : i32
    %31 = tpu.assume_multiple %30, 256 : i32
    %32 = arith.index_cast %31 : i32 to index
    %c0_18 = arith.constant 0 : index
    %33 = vector.load %arg1[%32, %c0_18] : memref<512x16xf32, #tpu.memory_space<vmem>>, vector<256x16xf32>
    %34 = arith.truncf %33 : vector<256x16xf32> to vector<256x16xbf16>
    %cst_19 = arith.constant dense<0.000000e+00> : vector<32x256xf32>
    %35 = tpu.matmul %0, %34, %cst_19 {dimension_numbers = #tpu.dot_dimension_numbers<[1], [1], [0], [0], [0, 0, 1, 0], [], []>} : vector<32x16xbf16>, vector<256x16xbf16>, vector<32x256xf32> -> vector<32x256xf32>
    %36 = vector.broadcast %1 : vector<32x1xf32> to vector<32x256xf32>
    %37 = arith.addf %35, %36 : vector<32x256xf32>
    %cst_20 = arith.constant 0.000000e+00 : f32
    %38 = vector.broadcast %cst_20 : f32 to vector<32x256xf32>
    %39 = arith.maximumf %37, %38 : vector<32x256xf32>
    %40 = arith.truncf %39 : vector<32x256xf32> to vector<32x256xbf16>
    %cst_21 = arith.constant dense<0.000000e+00> : vector<32x256xf32>
    %41 = tpu.matmul %2, %40, %cst_21 {dimension_numbers = #tpu.dot_dimension_numbers<[1], [0], [0], [1], [0, 0, 1, 1], [], []>} : vector<32x32xbf16>, vector<32x256xbf16>, vector<32x256xf32> -> vector<32x256xf32>
    %42 = vector.broadcast %3 : vector<32x1xf32> to vector<32x256xf32>
    %43 = arith.addf %41, %42 : vector<32x256xf32>
    %cst_22 = arith.constant 0.000000e+00 : f32
    %44 = vector.broadcast %cst_22 : f32 to vector<32x256xf32>
    %45 = arith.maximumf %43, %44 : vector<32x256xf32>
    %46 = arith.truncf %45 : vector<32x256xf32> to vector<32x256xbf16>
    %cst_23 = arith.constant dense<0.000000e+00> : vector<256x8xf32>
    %47 = tpu.matmul %46, %4, %cst_23 {dimension_numbers = #tpu.dot_dimension_numbers<[0], [0], [1], [1], [0, 1, 1, 1], [], []>} : vector<32x256xbf16>, vector<32x8xbf16>, vector<256x8xf32> -> vector<256x8xf32>
    %48 = vector.broadcast %5 : vector<1x8xf32> to vector<256x8xf32>
    %49 = arith.addf %47, %48 : vector<256x8xf32>
    %50 = math.tanh %49 : vector<256x8xf32>
    %51 = arith.truncf %50 : vector<256x8xf32> to vector<256x8xbf16>
    %52 = arith.index_cast %31 : i32 to index
    %c0_24 = arith.constant 0 : index
    %53 = vector.load %arg8[%52, %c0_24] : memref<512x8xbf16, #tpu.memory_space<vmem>>, vector<256x8xbf16>
    tpu.vector_store %arg8[%52, %c0_24], %51 {strides = array<i32>} : memref<512x8xbf16, #tpu.memory_space<vmem>>, vector<256x8xbf16>,
    %c2_i32 = arith.constant 2 : i32
    return
  }
  func.func @transform_0(%arg0: i32) -> (i32, i32) {
    %c0_i32 = arith.constant 0 : i32
    %c0_i32_0 = arith.constant 0 : i32
    return %arg0, %c0_i32 : i32, i32
  }
  func.func @transform_1(%arg0: i32) -> (i32, i32) {
    %c0_i32 = arith.constant 0 : i32
    %c0_i32_0 = arith.constant 0 : i32
    %c0_i32_1 = arith.constant 0 : i32
    return %c0_i32, %c0_i32_0 : i32, i32
  }
  func.func @transform_2(%arg0: i32) -> (i32, i32) {
    %c0_i32 = arith.constant 0 : i32
    %c0_i32_0 = arith.constant 0 : i32
    %c0_i32_1 = arith.constant 0 : i32
    return %c0_i32, %c0_i32_0 : i32, i32
  }
  func.func @transform_3(%arg0: i32) -> (i32, i32) {
    %c0_i32 = arith.constant 0 : i32
    %c0_i32_0 = arith.constant 0 : i32
    %c0_i32_1 = arith.constant 0 : i32
    return %c0_i32, %c0_i32_0 : i32, i32
  }
  func.func @transform_4(%arg0: i32) -> (i32, i32) {
    %c0_i32 = arith.constant 0 : i32
    %c0_i32_0 = arith.constant 0 : i32
    %c0_i32_1 = arith.constant 0 : i32
    return %c0_i32, %c0_i32_0 : i32, i32
  }
  func.func @transform_5(%arg0: i32) -> (i32, i32) {
    %c0_i32 = arith.constant 0 : i32
    %c0_i32_0 = arith.constant 0 : i32
    %c0_i32_1 = arith.constant 0 : i32
    return %c0_i32, %c0_i32_0 : i32, i32
  }
  func.func @transform_6(%arg0: i32) -> (i32, i32) {
    %c0_i32 = arith.constant 0 : i32
    %c0_i32_0 = arith.constant 0 : i32
    %c0_i32_1 = arith.constant 0 : i32
    return %c0_i32, %c0_i32_0 : i32, i32
  }
  func.func @transform_7(%arg0: i32) -> (i32, i32) {
    %c0_i32 = arith.constant 0 : i32
    %c0_i32_0 = arith.constant 0 : i32
    return %arg0, %c0_i32 : i32, i32
  }
}

</mosaic_0001>

<llo_original>
// kernel: neural_net_forward.1
$region0: #{neural_net_forward.1}
  #allocation0 [shape = 'u32[]', space=smem, size = 0x4, offset = 0x4, fixed_abs, tag = 'smem constant byte address 0x4 - core index']
  #allocation1 [shape = 'u32[144,128]{1,0:T(1,128)}', space=vmem, size = 0x12000, scoped, tag = 'internal scratch']
  %s0 = inlined_call_operand.vmem [shape: f32[1024,16], index: 0, kind: input, shape index: {}]
  %s1 = inlined_call_operand.vmem [shape: bf16[32,16], index: 1, kind: input, shape index: {}]
  %s2 = inlined_call_operand.vmem [shape: f32[32,1], index: 2, kind: input, shape index: {}]
  %s3 = inlined_call_operand.vmem [shape: bf16[32,32], index: 3, kind: input, shape index: {}]
  %s4 = inlined_call_operand.vmem [shape: f32[32,1], index: 4, kind: input, shape index: {}]
  %s5 = inlined_call_operand.vmem [shape: bf16[32,8], index: 5, kind: input, shape index: {}]
  %s6 = inlined_call_operand.vmem [shape: f32[1,8], index: 6, kind: input, shape index: {}]
  %s7 = inlined_call_operand.vmem [shape: bf16[1024,8], index: 7, kind: output, shape index: {}]
  %s8 = sld [smem:[#allocation0]]
  $region61: #{neural_net_forward.1} parent=0
    _
  %s10 = ssub.s32 1, %s8
  %s11 = scalar_select 0, %s10, %s8
  loop: start=0, step=1, limit=4
  $region2: #{neural_net_forward.1} parent=0 // loop_pre_header
    _
  $region3: #{neural_net_forward.1} parent=0 // loop_header
    %s13 = sphi 0, %s17
    %p14 = scmp.ge.s32.totalorder %s13, 4
    %s23 = sphi 0, %s25
    %s26 = sphi 0, %s23
    %s27 = sphi 0, %s26
    %s43 = sphi 0, %s27
    %s47 = sphi 0, %s47
    %s49 = sphi 0, %s47
    %s50 = sphi 0, %s49
    %s64 = sphi 0, %s50
    %s68 = sphi 0, %s68
    %s70 = sphi 0, %s68
    %s71 = sphi 0, %s70
    %s85 = sphi 0, %s71
    %s89 = sphi 0, %s89
    %s91 = sphi 0, %s89
    %s92 = sphi 0, %s91
    %s106 = sphi 0, %s92
    %s110 = sphi 0, %s110
    %s112 = sphi 0, %s110
    %s113 = sphi 0, %s112
    %s127 = sphi 0, %s113
    %s131 = sphi 0, %s131
    %s133 = sphi 0, %s131
    %s134 = sphi 0, %s133
    %s148 = sphi 0, %s134
    %s152 = sphi 0, %s152
    %s154 = sphi 0, %s152
    %s155 = sphi 0, %s154
    %s169 = sphi 0, %s155
    %s175 = sphi 0, %s177
    %s178 = sphi 0, %s175
    %s179 = sphi 0, %s178
    %s195 = sphi 0, %s179
  $region4: #{neural_net_forward.1} parent=0 // loop_header_branch
    %16 = sbr.rel (%p14) target = $region8
  $region5: #{neural_net_forward.1} parent=0 // loop_body
    %s18 = ssub.s32 %s13, 1
    %s19 = ssub.s32 %s13, 2
    %s20 = sadd.s32 %s13, 1
    %s21 = ssub.s32 %s13, %s20
    %p22 = scmp.eq.s32.totalorder %s21, 0
    %s24 = sadd.s32 %s23, 1
    %s25 = scalar_select %p22, %s23, %s24
    %p28 = pneg %p22
    %p29 = scmp.eq.s32.totalorder %s13, 1
    %p30 = por %p28, %p29
    %p31 = scmp.ne.s32.totalorder %s23, %s26
    %p32 = scmp.eq.s32.totalorder %s13, 0
    %p33 = por %p31, %p32
    %p34 = scmp.ne.s32.totalorder %s23, %s26
    %p35 = scmp.eq.s32.totalorder %s18, 1
    %p36 = por %p34, %p35
    %p37 = scmp.ne.s32.totalorder %s26, %s27
    %p38 = scmp.eq.s32.totalorder %s18, 0
    %p39 = por %p37, %p38
    %p40 = scmp.ne.s32.totalorder %s26, %s27
    %p41 = scmp.eq.s32.totalorder %s19, 1
    %p42 = por %p40, %p41
    %p44 = scmp.ne.s32.totalorder %s27, %s43
    %p45 = scmp.eq.s32.totalorder %s19, 0
    %p46 = por %p44, %p45
    %s48 = sadd.s32 %s47, 1
    %p51 = scmp.eq.s32.totalorder %s13, 1
    %p52 = scmp.ne.s32.totalorder %s47, %s49
    %p53 = scmp.eq.s32.totalorder %s13, 0
    %p54 = por %p52, %p53
    %p55 = scmp.ne.s32.totalorder %s47, %s49
    %p56 = scmp.eq.s32.totalorder %s18, 1
    %p57 = por %p55, %p56
    %p58 = scmp.ne.s32.totalorder %s49, %s50
    %p59 = scmp.eq.s32.totalorder %s18, 0
    %p60 = por %p58, %p59
    %p61 = scmp.ne.s32.totalorder %s49, %s50
    %p62 = scmp.eq.s32.totalorder %s19, 1
    %p63 = por %p61, %p62
    %p65 = scmp.ne.s32.totalorder %s50, %s64
    %p66 = scmp.eq.s32.totalorder %s19, 0
    %p67 = por %p65, %p66
    %s69 = sadd.s32 %s68, 1
    %p72 = scmp.eq.s32.totalorder %s13, 1
    %p73 = scmp.ne.s32.totalorder %s68, %s70
    %p74 = scmp.eq.s32.totalorder %s13, 0
    %p75 = por %p73, %p74
    %p76 = scmp.ne.s32.totalorder %s68, %s70
    %p77 = scmp.eq.s32.totalorder %s18, 1
    %p78 = por %p76, %p77
    %p79 = scmp.ne.s32.totalorder %s70, %s71
    %p80 = scmp.eq.s32.totalorder %s18, 0
    %p81 = por %p79, %p80
    %p82 = scmp.ne.s32.totalorder %s70, %s71
    %p83 = scmp.eq.s32.totalorder %s19, 1
    %p84 = por %p82, %p83
    %p86 = scmp.ne.s32.totalorder %s71, %s85
    %p87 = scmp.eq.s32.totalorder %s19, 0
    %p88 = por %p86, %p87
    %s90 = sadd.s32 %s89, 1
    %p93 = scmp.eq.s32.totalorder %s13, 1
    %p94 = scmp.ne.s32.totalorder %s89, %s91
    %p95 = scmp.eq.s32.totalorder %s13, 0
    %p96 = por %p94, %p95
    %p97 = scmp.ne.s32.totalorder %s89, %s91
    %p98 = scmp.eq.s32.totalorder %s18, 1
    %p99 = por %p97, %p98
    %p100 = scmp.ne.s32.totalorder %s91, %s92
    %p101 = scmp.eq.s32.totalorder %s18, 0
    %p102 = por %p100, %p101
    %p103 = scmp.ne.s32.totalorder %s91, %s92
    %p104 = scmp.eq.s32.totalorder %s19, 1
    %p105 = por %p103, %p104
    %p107 = scmp.ne.s32.totalorder %s92, %s106
    %p108 = scmp.eq.s32.totalorder %s19, 0
    %p109 = por %p107, %p108
    %s111 = sadd.s32 %s110, 1
    %p114 = scmp.eq.s32.totalorder %s13, 1
    %p115 = scmp.ne.s32.totalorder %s110, %s112
    %p116 = scmp.eq.s32.totalorder %s13, 0
    %p117 = por %p115, %p116
    %p118 = scmp.ne.s32.totalorder %s110, %s112
    %p119 = scmp.eq.s32.totalorder %s18, 1
    %p120 = por %p118, %p119
    %p121 = scmp.ne.s32.totalorder %s112, %s113
    %p122 = scmp.eq.s32.totalorder %s18, 0
    %p123 = por %p121, %p122
    %p124 = scmp.ne.s32.totalorder %s112, %s113
    %p125 = scmp.eq.s32.totalorder %s19, 1
    %p126 = por %p124, %p125
    %p128 = scmp.ne.s32.totalorder %s113, %s127
    %p129 = scmp.eq.s32.totalorder %s19, 0
    %p130 = por %p128, %p129
    %s132 = sadd.s32 %s131, 1
    %p135 = scmp.eq.s32.totalorder %s13, 1
    %p136 = scmp.ne.s32.totalorder %s131, %s133
    %p137 = scmp.eq.s32.totalorder %s13, 0
    %p138 = por %p136, %p137
    %p139 = scmp.ne.s32.totalorder %s131, %s133
    %p140 = scmp.eq.s32.totalorder %s18, 1
    %p141 = por %p139, %p140
    %p142 = scmp.ne.s32.totalorder %s133, %s134
    %p143 = scmp.eq.s32.totalorder %s18, 0
    %p144 = por %p142, %p143
    %p145 = scmp.ne.s32.totalorder %s133, %s134
    %p146 = scmp.eq.s32.totalorder %s19, 1
    %p147 = por %p145, %p146
    %p149 = scmp.ne.s32.totalorder %s134, %s148
    %p150 = scmp.eq.s32.totalorder %s19, 0
    %p151 = por %p149, %p150
    %s153 = sadd.s32 %s152, 1
    %p156 = scmp.eq.s32.totalorder %s13, 1
    %p157 = scmp.ne.s32.totalorder %s152, %s154
    %p158 = scmp.eq.s32.totalorder %s13, 0
    %p159 = por %p157, %p158
    %p160 = scmp.ne.s32.totalorder %s152, %s154
    %p161 = scmp.eq.s32.totalorder %s18, 1
    %p162 = por %p160, %p161
    %p163 = scmp.ne.s32.totalorder %s154, %s155
    %p164 = scmp.eq.s32.totalorder %s18, 0
    %p165 = por %p163, %p164
    %p166 = scmp.ne.s32.totalorder %s154, %s155
    %p167 = scmp.eq.s32.totalorder %s19, 1
    %p168 = por %p166, %p167
    %p170 = scmp.ne.s32.totalorder %s155, %s169
    %p171 = scmp.eq.s32.totalorder %s19, 0
    %p172 = por %p170, %p171
    %s173 = ssub.s32 %s13, %s20
    %p174 = scmp.eq.s32.totalorder %s173, 0
    %s176 = sadd.s32 %s175, 1
    %s177 = scalar_select %p174, %s175, %s176
    %p180 = pneg %p174
    %p181 = scmp.eq.s32.totalorder %s13, 1
    %p182 = por %p180, %p181
    %p183 = scmp.ne.s32.totalorder %s175, %s178
    %p184 = scmp.eq.s32.totalorder %s13, 0
    %p185 = por %p183, %p184
    %p186 = scmp.ne.s32.totalorder %s175, %s178
    %p187 = scmp.eq.s32.totalorder %s18, 1
    %p188 = por %p186, %p187
    %p189 = scmp.ne.s32.totalorder %s178, %s179
    %p190 = scmp.eq.s32.totalorder %s18, 0
    %p191 = por %p189, %p190
    %p192 = scmp.ne.s32.totalorder %s178, %s179
    %p193 = scmp.eq.s32.totalorder %s19, 1
    %p194 = por %p192, %p193
    %p196 = scmp.ne.s32.totalorder %s179, %s195
    %p197 = scmp.eq.s32.totalorder %s19, 0
    %p198 = por %p196, %p197
    %p199 = scmp.le.s32.totalorder 1, %s13
    %p200 = scmp.lt.s32.totalorder %s13, 3
    %p201 = pnand %p199, %p200
    %p202 = pneg %p201
    // Predicated region
    $region9: #{neural_net_forward.1} parent=5 // pred_check
      _
    $region10: #{neural_net_forward.1} parent=5 // pred_check_branch
      %204 = sbr.rel (%p201) target = $region12
    $region11: #{neural_net_forward.1} parent=5 // pred_region
      %s205 = ssub.s32 %s13, 1
      // Predicated region
      $region13: #{neural_net_forward.1} parent=11 // pred_check
        %p206 = pneg %p60
      $region14: #{neural_net_forward.1} parent=11 // pred_check_branch
        %208 = sbr.rel (%p206) target = $region16
      $region15: #{neural_net_forward.1} parent=11 // pred_region
        _
      $region16: #{neural_net_forward.1} parent=11 // pred_fallthru
        _
      // Predicated region
      $region17: #{neural_net_forward.1} parent=11 // pred_check
        %p209 = pneg %p81
      $region18: #{neural_net_forward.1} parent=11 // pred_check_branch
        %211 = sbr.rel (%p209) target = $region20
      $region19: #{neural_net_forward.1} parent=11 // pred_region
        _
      $region20: #{neural_net_forward.1} parent=11 // pred_fallthru
        _
      // Predicated region
      $region21: #{neural_net_forward.1} parent=11 // pred_check
        %p212 = pneg %p102
      $region22: #{neural_net_forward.1} parent=11 // pred_check_branch
        %214 = sbr.rel (%p212) target = $region24
      $region23: #{neural_net_forward.1} parent=11 // pred_region
        _
      $region24: #{neural_net_forward.1} parent=11 // pred_fallthru
        _
      // Predicated region
      $region25: #{neural_net_forward.1} parent=11 // pred_check
        %p215 = pneg %p123
      $region26: #{neural_net_forward.1} parent=11 // pred_check_branch
        %217 = sbr.rel (%p215) target = $region28
      $region27: #{neural_net_forward.1} parent=11 // pred_region
        _
      $region28: #{neural_net_forward.1} parent=11 // pred_fallthru
        _
      // Predicated region
      $region29: #{neural_net_forward.1} parent=11 // pred_check
        %p218 = pneg %p144
      $region30: #{neural_net_forward.1} parent=11 // pred_check_branch
        %220 = sbr.rel (%p218) target = $region32
      $region31: #{neural_net_forward.1} parent=11 // pred_region
        _
      $region32: #{neural_net_forward.1} parent=11 // pred_fallthru
        _
      // Predicated region
      $region33: #{neural_net_forward.1} parent=11 // pred_check
        %p221 = pneg %p165
      $region34: #{neural_net_forward.1} parent=11 // pred_check_branch
        %223 = sbr.rel (%p221) target = $region36
      $region35: #{neural_net_forward.1} parent=11 // pred_region
        _
      $region36: #{neural_net_forward.1} parent=11 // pred_fallthru
        _
    $region12: #{neural_net_forward.1} parent=5 // pred_fallthru
      _
    %p224 = scmp.lt.s32.totalorder %s13, 2
    // Predicated region
    $region37: #{neural_net_forward.1} parent=5 // pred_check
      %p225 = pneg %p224
    $region38: #{neural_net_forward.1} parent=5 // pred_check_branch
      %227 = sbr.rel (%p225) target = $region40
    $region39: #{neural_net_forward.1} parent=5 // pred_region
      // Predicated region
      $region41: #{neural_net_forward.1} parent=39 // pred_check
        %p228 = pneg %p33
      $region42: #{neural_net_forward.1} parent=39 // pred_check_branch
        %230 = sbr.rel (%p228) target = $region44
      $region43: #{neural_net_forward.1} parent=39 // pred_region
        %s231 = smul.u32 64, %s13
        %p232 = scmp.lt.s32.totalorder %s231, 127
        %s233 = scalar_select %p232, %s231, 127
        %s234 = smul.addr %s233, 8
        %s235 = scalar_lea.vmem %s0, %s234
        %s236 = smul.u32 64, %s13
      $region44: #{neural_net_forward.1} parent=39 // pred_fallthru
        _
    $region40: #{neural_net_forward.1} parent=5 // pred_fallthru
      _
    %p237 = scmp.le.s32.totalorder 1, %s13
    %p238 = scmp.lt.s32.totalorder %s13, 3
    %p239 = pnand %p237, %p238
    %p240 = pneg %p239
    // Predicated region
    $region45: #{neural_net_forward.1} parent=5 // pred_check
      _
    $region46: #{neural_net_forward.1} parent=5 // pred_check_branch
      %242 = sbr.rel (%p239) target = $region48
    $region47: #{neural_net_forward.1} parent=5 // pred_region
      %s243 = ssub.s32 %s13, 1
      %s244 = smul.u32 64, %s18
      %p245 = scmp.lt.s32.totalorder %s244, 127
      %s246 = scalar_select %p245, %s244, 127
      %s247 = smul.addr %s246, 8
      %s248 = scalar_lea.vmem %s0, %s247
      %p249 = pneg %p39
      %p250 = pneg %p36
      %p251 = pneg %p60
      %p252 = pneg %p57
      %p253 = pneg %p81
      %p254 = pneg %p78
      %p255 = pneg %p102
      %p256 = pneg %p99
      %p257 = pneg %p123
      %p258 = pneg %p120
      %p259 = pneg %p144
      %p260 = pneg %p141
      %p261 = pneg %p165
      %p262 = pneg %p162
      %p263 = pneg %p191
      %p264 = pneg %p188
      %s265 = smul.u32 64, %s18
      %p266 = scmp.lt.s32.totalorder %s265, 127
      %s267 = scalar_select %p266, %s265, 127
      %s268 = smul.addr %s267, 4
      %s269 = scalar_lea.vmem %s7, %s268
      %s270 = smul.u32 64, %s18
      %p271 = scmp.lt.s32.totalorder %s270, 127
      %s272 = scalar_select %p271, %s270, 127
      %s273 = smul.addr %s272, 8
      %s274 = scalar_lea.vmem %s0, %s273
      %s275 = smul.u32 64, %s18
      %s276 = smul.u32 64, %s18
      %p277 = scmp.lt.s32.totalorder %s276, 127
      %s278 = scalar_select %p277, %s276, 127
      %s279 = smul.addr %s278, 4
      %s280 = scalar_lea.vmem %s7, %s279
      %s281 = smul.u32 64, %s18
      %v283 = vld [vmem:[%s1] sm:$0xf]
      %v284 = vld [vmem:[%s1 + $0x4] sm:$0xf]
      %v285 = vld [vmem:[%s1 + $0x8] sm:$0xf]
      %v286 = vld [vmem:[%s1 + $0xc] sm:$0xf]
      %v287 = vld [vmem:[%s2] sm:$0xff]
      %v288 = vld [vmem:[%s2 + $0x8] sm:$0xff]
      %v289 = vld [vmem:[%s2 + $0x10] sm:$0xff]
      %v290 = vld [vmem:[%s2 + $0x18] sm:$0xff]
      %v291 = vld [vmem:[%s3] sm:$0xf]
      %v292 = vld [vmem:[%s3 + $0x4] sm:$0xf]
      %v293 = vld [vmem:[%s3 + $0x8] sm:$0xf]
      %v294 = vld [vmem:[%s3 + $0xc] sm:$0xf]
      %v295 = vld [vmem:[%s4] sm:$0xff]
      %v296 = vld [vmem:[%s4 + $0x8] sm:$0xff]
      %v297 = vld [vmem:[%s4 + $0x10] sm:$0xff]
      %v298 = vld [vmem:[%s4 + $0x18] sm:$0xff]
      %v299 = vld [vmem:[%s5] sm:$0xf]
      %v300 = vld [vmem:[%s5 + $0x4] sm:$0xf]
      %v301 = vld [vmem:[%s5 + $0x8] sm:$0xf]
      %v302 = vld [vmem:[%s5 + $0xc] sm:$0xf]
      %v303 = vld [vmem:[%s6] sm:$0x1]
      %v304 = vld [vmem:[%s274] sm:$0xff]
      %v305 = vld [vmem:[%s274 + $0x8] sm:$0xff]
      %v306 = vld [vmem:[%s274 + $0x10] sm:$0xff]
      %v307 = vld [vmem:[%s274 + $0x18] sm:$0xff]
      %v308 = vld [vmem:[%s274 + $0x20] sm:$0xff]
      %v309 = vld [vmem:[%s274 + $0x28] sm:$0xff]
      %v310 = vld [vmem:[%s274 + $0x30] sm:$0xff]
      %v311 = vld [vmem:[%s274 + $0x38] sm:$0xff]
      %v312 = vld [vmem:[%s274 + $0x40] sm:$0xff]
      %v313 = vld [vmem:[%s274 + $0x48] sm:$0xff]
      %v314 = vld [vmem:[%s274 + $0x50] sm:$0xff]
      %v315 = vld [vmem:[%s274 + $0x58] sm:$0xff]
      %v316 = vld [vmem:[%s274 + $0x60] sm:$0xff]
      %v317 = vld [vmem:[%s274 + $0x68] sm:$0xff]
      %v318 = vld [vmem:[%s274 + $0x70] sm:$0xff]
      %v319 = vld [vmem:[%s274 + $0x78] sm:$0xff]
      %v320 = vld [vmem:[%s274 + $0x80] sm:$0xff]
      %v321 = vld [vmem:[%s274 + $0x88] sm:$0xff]
      %v322 = vld [vmem:[%s274 + $0x90] sm:$0xff]
      %v323 = vld [vmem:[%s274 + $0x98] sm:$0xff]
      %v324 = vld [vmem:[%s274 + $0xa0] sm:$0xff]
      %v325 = vld [vmem:[%s274 + $0xa8] sm:$0xff]
      %v326 = vld [vmem:[%s274 + $0xb0] sm:$0xff]
      %v327 = vld [vmem:[%s274 + $0xb8] sm:$0xff]
      %v328 = vld [vmem:[%s274 + $0xc0] sm:$0xff]
      %v329 = vld [vmem:[%s274 + $0xc8] sm:$0xff]
      %v330 = vld [vmem:[%s274 + $0xd0] sm:$0xff]
      %v331 = vld [vmem:[%s274 + $0xd8] sm:$0xff]
      %v332 = vld [vmem:[%s274 + $0xe0] sm:$0xff]
      %v333 = vld [vmem:[%s274 + $0xe8] sm:$0xff]
      %v334 = vld [vmem:[%s274 + $0xf0] sm:$0xff]
      %v335 = vld [vmem:[%s274 + $0xf8] sm:$0xff]
      %v336 = vpack.c.bf16 %v305, %v304
      %v337 = vpack.c.bf16 %v307, %v306
      %v338 = vpack.c.bf16 %v309, %v308
      %v339 = vpack.c.bf16 %v311, %v310
      %v340 = vpack.c.bf16 %v313, %v312
      %v341 = vpack.c.bf16 %v315, %v314
      %v342 = vpack.c.bf16 %v317, %v316
      %v343 = vpack.c.bf16 %v319, %v318
      %v344 = vpack.c.bf16 %v321, %v320
      %v345 = vpack.c.bf16 %v323, %v322
      %v346 = vpack.c.bf16 %v325, %v324
      %v347 = vpack.c.bf16 %v327, %v326
      %v348 = vpack.c.bf16 %v329, %v328
      %v349 = vpack.c.bf16 %v331, %v330
      %v350 = vpack.c.bf16 %v333, %v332
      %v351 = vpack.c.bf16 %v335, %v334
      %353 = vset.pattern.permute.xlu0 0
      %354 = vperm.xlu0 %353, %v287
      %v355 = vpop.permute.xlu0 %354
      %358 = vset.pattern.permute.xlu0 0
      %359 = vperm.xlu0 %358, %v288
      %v360 = vpop.permute.xlu0 %359
      %363 = vset.pattern.permute.xlu0 0
      %364 = vperm.xlu0 %363, %v289
      %v365 = vpop.permute.xlu0 %364
      %368 = vset.pattern.permute.xlu0 0
      %369 = vperm.xlu0 %368, %v290
      %v370 = vpop.permute.xlu0 %369
      %v376 = vunpack.c.l.b16 %v283
      %v377 = vunpack.c.l.b16 %v284
      %v378 = vunpack.c.l.b16 %v285
      %v379 = vunpack.c.l.b16 %v286
      %v380 = vpack.c.b16 %v377, %v376
      %v381 = vpack.c.b16 %v379, %v378
      %vm382 = vcmask 130048
      %v384 = vsel %vm382, %v380, 0
      %v387 = vsel %vm382, %v381, 0
      %v390 = vsel %vm382, %v336, 0
      %v393 = vsel %vm382, %v337, 0
      %v396 = vsel %vm382, %v338, 0
      %v399 = vsel %vm382, %v339, 0
      %v402 = vsel %vm382, %v340, 0
      %v405 = vsel %vm382, %v341, 0
      %v408 = vsel %vm382, %v342, 0
      %v411 = vsel %vm382, %v343, 0
      %v414 = vsel %vm382, %v344, 0
      %v417 = vsel %vm382, %v345, 0
      %v420 = vsel %vm382, %v346, 0
      %v423 = vsel %vm382, %v347, 0
      %v426 = vsel %vm382, %v348, 0
      %v429 = vsel %vm382, %v349, 0
      %v432 = vsel %vm382, %v350, 0
      %v435 = vsel %vm382, %v351, 0
      %437 = vmatprep.subr.bf16.mxu0 0
      %438 = vmatpush1.bf16.xpose.msra.mxu0 %v390
      %439 = vmatprep.subr.bf16.mxu0 0
      %440 = vmatpush1.bf16.xpose.msra.mxu0 %v393
      %441 = vmatprep.subr.bf16.mxu0 0
      %442 = vmatpush1.bf16.xpose.msra.mxu0 %v396
      %443 = vmatprep.subr.bf16.mxu0 0
      %444 = vmatpush1.bf16.xpose.msra.mxu0 %v399
      %445 = vmatprep.subr.bf16.mxu0 0
      %446 = vmatpush1.bf16.xpose.msra.mxu0 %v402
      %447 = vmatprep.subr.bf16.mxu0 0
      %448 = vmatpush1.bf16.xpose.msra.mxu0 %v405
      %449 = vmatprep.subr.bf16.mxu0 0
      %450 = vmatpush1.bf16.xpose.msra.mxu0 %v408
      %451 = vmatprep.subr.bf16.mxu0 0
      %452 = vmatpush1.bf16.xpose.msra.mxu0 %v411
      %453 = vmatprep.subr.bf16.mxu0 0
      %454 = vmatpush1.bf16.xpose.msra.mxu0 %v414
      %455 = vmatprep.subr.bf16.mxu0 0
      %456 = vmatpush1.bf16.xpose.msra.mxu0 %v417
      %457 = vmatprep.subr.bf16.mxu0 0
      %458 = vmatpush1.bf16.xpose.msra.mxu0 %v420
      %459 = vmatprep.subr.bf16.mxu0 0
      %460 = vmatpush1.bf16.xpose.msra.mxu0 %v423
      %461 = vmatprep.subr.bf16.mxu0 0
      %462 = vmatpush1.bf16.xpose.msra.mxu0 %v426
      %463 = vmatprep.subr.bf16.mxu0 0
      %464 = vmatpush1.bf16.xpose.msra.mxu0 %v429
      %465 = vmatprep.subr.bf16.mxu0 0
      %466 = vmatpush1.bf16.xpose.msra.mxu0 %v432
      %467 = vmatprep.subr.bf16.mxu0 0
      %468 = vmatpush1.bf16.xpose.msra.mxu0 %v435
      %469 = vmatprep.mubr.bf16.mxu0 0
      %470 = vmatmul.mubr.bf16.gmra.mrb[0].mxu0 %v384
      %v471 = vpop.f32.mrb[0].mxu0
      %v472 = vadd.f32 %v355, %v471
      %v473 = vpop.f32.mrb[0].mxu0
      %v474 = vadd.f32 %v355, %v473
      %v475 = vpop.f32.mrb[0].mxu0
      %v476 = vadd.f32 %v360, %v475
      %v477 = vpop.f32.mrb[0].mxu0
      %v478 = vadd.f32 %v360, %v477
      %479 = vmatprep.mubr.bf16.mxu0 0
      %480 = vmatmul.mubr.bf16.gmra.mrb[0].mxu0 %v387
      %v481 = vpop.f32.mrb[0].mxu0
      %v482 = vadd.f32 %v365, %v481
      %v483 = vpop.f32.mrb[0].mxu0
      %v484 = vadd.f32 %v365, %v483
      %v485 = vpop.f32.mrb[0].mxu0
      %v486 = vadd.f32 %v370, %v485
      %v487 = vpop.f32.mrb[0].mxu0
      %v488 = vadd.f32 %v370, %v487
      %489 = vdwg.mxu0
      %v490 = vmax.f32 %v472, 0.0
      %v491 = vmax.f32 %v474, 0.0
      %v492 = vmax.f32 %v476, 0.0
      %v493 = vmax.f32 %v478, 0.0
      %v494 = vmax.f32 %v482, 0.0
      %v495 = vmax.f32 %v484, 0.0
      %v496 = vmax.f32 %v486, 0.0
      %v497 = vmax.f32 %v488, 0.0
      %v498 = vpack.c.bf16 %v492, %v490
      %v499 = vpack.c.bf16 %v493, %v491
      %v500 = vpack.c.bf16 %v496, %v494
      %v501 = vpack.c.bf16 %v497, %v495
      %503 = vset.pattern.permute.xlu0 0
      %504 = vperm.xlu0 %503, %v295
      %v505 = vpop.permute.xlu0 %504
      %508 = vset.pattern.permute.xlu0 0
      %509 = vperm.xlu0 %508, %v296
      %v510 = vpop.permute.xlu0 %509
      %513 = vset.pattern.permute.xlu0 0
      %514 = vperm.xlu0 %513, %v297
      %v515 = vpop.permute.xlu0 %514
      %518 = vset.pattern.permute.xlu0 0
      %519 = vperm.xlu0 %518, %v298
      %v520 = vpop.permute.xlu0 %519
      %v526 = vunpack.c.l.b16 %v291
      %v527 = vunpack.c.l.b16 %v292
      %v528 = vunpack.c.l.b16 %v293
      %v529 = vunpack.c.l.b16 %v294
      %v530 = vpack.c.b16 %v527, %v526
      %v531 = vpack.c.b16 %v529, %v528
      %vm532 = vcmask 261120
      %v534 = vsel %vm532, %v530, 0
      %v537 = vsel %vm532, %v531, 0
      %539 = vmatprep.subr.bf16.mxu0 %v499
      %540 = vmatpush1.bf16.msra.mxu0 %v498
      %541 = vmatprep.subr.bf16.mxu0 %v501
      %542 = vmatpush1.bf16.msra.mxu0 %v500
      %543 = vmatprep.subr.bf16.mxu0 0
      %544 = vmatpush1.bf16.msra.mxu0 0
      %545 = vmatprep.subr.bf16.mxu0 0
      %546 = vmatpush1.bf16.msra.mxu0 0
      %547 = vmatprep.subr.bf16.mxu0 0
      %548 = vmatpush1.bf16.msra.mxu0 0
      %549 = vmatprep.subr.bf16.mxu0 0
      %550 = vmatpush1.bf16.msra.mxu0 0
      %551 = vmatprep.subr.bf16.mxu0 0
      %552 = vmatpush1.bf16.msra.mxu0 0
      %553 = vmatprep.subr.bf16.mxu0 0
      %554 = vmatpush1.bf16.msra.mxu0 0
      %555 = vmatprep.subr.bf16.mxu0 0
      %556 = vmatpush1.bf16.msra.mxu0 0
      %557 = vmatprep.subr.bf16.mxu0 0
      %558 = vmatpush1.bf16.msra.mxu0 0
      %559 = vmatprep.subr.bf16.mxu0 0
      %560 = vmatpush1.bf16.msra.mxu0 0
      %561 = vmatprep.subr.bf16.mxu0 0
      %562 = vmatpush1.bf16.msra.mxu0 0
      %563 = vmatprep.subr.bf16.mxu0 0
      %564 = vmatpush1.bf16.msra.mxu0 0
      %565 = vmatprep.subr.bf16.mxu0 0
      %566 = vmatpush1.bf16.msra.mxu0 0
      %567 = vmatprep.subr.bf16.mxu0 0
      %568 = vmatpush1.bf16.msra.mxu0 0
      %569 = vmatprep.subr.bf16.mxu0 0
      %570 = vmatpush1.bf16.msra.mxu0 0
      %571 = vmatprep.mubr.bf16.mxu0 0
      %572 = vmatmul.mubr.bf16.gmra.mrb[0].mxu0 %v534
      %v573 = vpop.f32.mrb[0].mxu0
      %v574 = vadd.f32 %v505, %v573
      %v575 = vpop.f32.mrb[0].mxu0
      %v576 = vadd.f32 %v505, %v575
      %v577 = vpop.f32.mrb[0].mxu0
      %v578 = vadd.f32 %v510, %v577
      %v579 = vpop.f32.mrb[0].mxu0
      %v580 = vadd.f32 %v510, %v579
      %581 = vmatprep.mubr.bf16.mxu0 0
      %582 = vmatmul.mubr.bf16.gmra.mrb[0].mxu0 %v537
      %v583 = vpop.f32.mrb[0].mxu0
      %v584 = vadd.f32 %v515, %v583
      %v585 = vpop.f32.mrb[0].mxu0
      %v586 = vadd.f32 %v515, %v585
      %v587 = vpop.f32.mrb[0].mxu0
      %v588 = vadd.f32 %v520, %v587
      %v589 = vpop.f32.mrb[0].mxu0
      %v590 = vadd.f32 %v520, %v589
      %591 = vdwg.mxu0
      %v592 = vmax.f32 %v574, 0.0
      %v593 = vmax.f32 %v576, 0.0
      %v594 = vmax.f32 %v578, 0.0
      %v595 = vmax.f32 %v580, 0.0
      %v596 = vmax.f32 %v584, 0.0
      %v597 = vmax.f32 %v586, 0.0
      %v598 = vmax.f32 %v588, 0.0
      %v599 = vmax.f32 %v590, 0.0
      %v600 = vpack.c.bf16 %v594, %v592
      %v601 = vpack.c.bf16 %v595, %v593
      %v602 = vpack.c.bf16 %v598, %v596
      %v603 = vpack.c.bf16 %v599, %v597
      %v605 = vlaneseq
      %v606 = vshrl.u32 %v605, 7
      %v607 = vsub.s32 0, %v606
      %v608 = vrot.slane %v303, %v607
      %610 = vxpose.xlu0.c.b16.start [1/8] %v600, 128
      %611 = vxpose.xlu0.c.b16.cont [2/8] %v602, 128
      %612 = vxpose.xlu0.c.b16.cont [3/8] 0, 128
      %613 = vxpose.xlu0.c.b16.cont [4/8] 0, 128
      %614 = vxpose.xlu0.c.b16.cont [5/8] 0, 128
      %615 = vxpose.xlu0.c.b16.cont [6/8] 0, 128
      %616 = vxpose.xlu0.c.b16.cont [7/8] 0, 128
      %617 = vxpose.xlu0.c.b16.end [8/8] 0, 128
      %v618 = vpop.trf.xlu0
      %v619 = vpop.trf.xlu0
      %v620 = vpop.trf.xlu0
      %v621 = vpop.trf.xlu0
      %v622 = vpop.trf.xlu0
      %v623 = vpop.trf.xlu0
      %v624 = vpop.trf.xlu0
      %v625 = vpop.trf.xlu0
      %626 = vxpose.xlu0.c.b16.start [1/8] %v601, 128
      %627 = vxpose.xlu0.c.b16.cont [2/8] %v603, 128
      %628 = vxpose.xlu0.c.b16.cont [3/8] 0, 128
      %629 = vxpose.xlu0.c.b16.cont [4/8] 0, 128
      %630 = vxpose.xlu0.c.b16.cont [5/8] 0, 128
      %631 = vxpose.xlu0.c.b16.cont [6/8] 0, 128
      %632 = vxpose.xlu0.c.b16.cont [7/8] 0, 128
      %633 = vxpose.xlu0.c.b16.end [8/8] 0, 128
      %v634 = vpop.trf.xlu0
      %v635 = vpop.trf.xlu0
      %v636 = vpop.trf.xlu0
      %v637 = vpop.trf.xlu0
      %v638 = vpop.trf.xlu0
      %v639 = vpop.trf.xlu0
      %v640 = vpop.trf.xlu0
      %v641 = vpop.trf.xlu0
      %v646 = vunpack.c.l.b16 %v299
      %v647 = vunpack.c.l.b16 %v300
      %v648 = vunpack.c.l.b16 %v301
      %v649 = vunpack.c.l.b16 %v302
      %v650 = vpack.c.b16 %v647, %v646
      %v651 = vpack.c.b16 %v649, %v648
      %v655 = vsel %vm532, %v618, 0
      %v658 = vsel %vm532, %v619, 0
      %v661 = vsel %vm532, %v620, 0
      %v664 = vsel %vm532, %v621, 0
      %v667 = vsel %vm532, %v622, 0
      %v670 = vsel %vm532, %v623, 0
      %v673 = vsel %vm532, %v624, 0
      %v676 = vsel %vm532, %v625, 0
      %v679 = vsel %vm532, %v634, 0
      %v682 = vsel %vm532, %v635, 0
      %v685 = vsel %vm532, %v636, 0
      %v688 = vsel %vm532, %v637, 0
      %v691 = vsel %vm532, %v638, 0
      %v694 = vsel %vm532, %v639, 0
      %v697 = vsel %vm532, %v640, 0
      %v700 = vsel %vm532, %v641, 0
      %702 = vmatprep.subr.bf16.mxu0 0
      %703 = vmatpush1.bf16.msra.mxu0 %v650
      %704 = vmatprep.subr.bf16.mxu0 0
      %705 = vmatpush1.bf16.msra.mxu0 %v651
      %706 = vmatprep.subr.bf16.mxu0 0
      %707 = vmatpush1.bf16.msra.mxu0 0
      %708 = vmatprep.subr.bf16.mxu0 0
      %709 = vmatpush1.bf16.msra.mxu0 0
      %710 = vmatprep.subr.bf16.mxu0 0
      %711 = vmatpush1.bf16.msra.mxu0 0
      %712 = vmatprep.subr.bf16.mxu0 0
      %713 = vmatpush1.bf16.msra.mxu0 0
      %714 = vmatprep.subr.bf16.mxu0 0
      %715 = vmatpush1.bf16.msra.mxu0 0
      %716 = vmatprep.subr.bf16.mxu0 0
      %717 = vmatpush1.bf16.msra.mxu0 0
      %718 = vmatprep.subr.bf16.mxu0 0
      %719 = vmatpush1.bf16.msra.mxu0 0
      %720 = vmatprep.subr.bf16.mxu0 0
      %721 = vmatpush1.bf16.msra.mxu0 0
      %722 = vmatprep.subr.bf16.mxu0 0
      %723 = vmatpush1.bf16.msra.mxu0 0
      %724 = vmatprep.subr.bf16.mxu0 0
      %725 = vmatpush1.bf16.msra.mxu0 0
      %726 = vmatprep.subr.bf16.mxu0 0
      %727 = vmatpush1.bf16.msra.mxu0 0
      %728 = vmatprep.subr.bf16.mxu0 0
      %729 = vmatpush1.bf16.msra.mxu0 0
      %730 = vmatprep.subr.bf16.mxu0 0
      %731 = vmatpush1.bf16.msra.mxu0 0
      %732 = vmatprep.subr.bf16.mxu0 0
      %733 = vmatpush1.bf16.msra.mxu0 0
      %734 = vmatprep.mubr.bf16.mxu0 0
      %735 = vmatmul.mubr.bf16.gmra.mrb[0].mxu0 %v655
      %v736 = vpop.f32.mrb[0].mxu0
      %v737 = vadd.f32 %v608, %v736
      %v738 = vpop.f32.mrb[0].mxu0
      %v739 = vpop.f32.mrb[0].mxu0
      %v740 = vadd.f32 %v608, %v739
      %v741 = vpop.f32.mrb[0].mxu0
      %742 = vmatprep.mubr.bf16.mxu0 0
      %743 = vmatmul.mubr.bf16.gmra.mrb[0].mxu0 %v658
      %v744 = vpop.f32.mrb[0].mxu0
      %v745 = vadd.f32 %v608, %v744
      %v746 = vpop.f32.mrb[0].mxu0
      %v747 = vpop.f32.mrb[0].mxu0
      %v748 = vadd.f32 %v608, %v747
      %v749 = vpop.f32.mrb[0].mxu0
      %750 = vmatprep.mubr.bf16.mxu0 0
      %751 = vmatmul.mubr.bf16.gmra.mrb[0].mxu0 %v661
      %v752 = vpop.f32.mrb[0].mxu0
      %v753 = vadd.f32 %v608, %v752
      %v754 = vpop.f32.mrb[0].mxu0
      %v755 = vpop.f32.mrb[0].mxu0
      %v756 = vadd.f32 %v608, %v755
      %v757 = vpop.f32.mrb[0].mxu0
      %758 = vmatprep.mubr.bf16.mxu0 0
      %759 = vmatmul.mubr.bf16.gmra.mrb[0].mxu0 %v664
      %v760 = vpop.f32.mrb[0].mxu0
      %v761 = vadd.f32 %v608, %v760
      %v762 = vpop.f32.mrb[0].mxu0
      %v763 = vpop.f32.mrb[0].mxu0
      %v764 = vadd.f32 %v608, %v763
      %v765 = vpop.f32.mrb[0].mxu0
      %766 = vmatprep.mubr.bf16.mxu0 0
      %767 = vmatmul.mubr.bf16.gmra.mrb[0].mxu0 %v667
      %v768 = vpop.f32.mrb[0].mxu0
      %v769 = vadd.f32 %v608, %v768
      %v770 = vpop.f32.mrb[0].mxu0
      %v771 = vpop.f32.mrb[0].mxu0
      %v772 = vadd.f32 %v608, %v771
      %v773 = vpop.f32.mrb[0].mxu0
      %774 = vmatprep.mubr.bf16.mxu0 0
      %775 = vmatmul.mubr.bf16.gmra.mrb[0].mxu0 %v670
      %v776 = vpop.f32.mrb[0].mxu0
      %v777 = vadd.f32 %v608, %v776
      %v778 = vpop.f32.mrb[0].mxu0
      %v779 = vpop.f32.mrb[0].mxu0
      %v780 = vadd.f32 %v608, %v779
      %v781 = vpop.f32.mrb[0].mxu0
      %782 = vmatprep.mubr.bf16.mxu0 0
      %783 = vmatmul.mubr.bf16.gmra.mrb[0].mxu0 %v673
      %v784 = vpop.f32.mrb[0].mxu0
      %v785 = vadd.f32 %v608, %v784
      %v786 = vpop.f32.mrb[0].mxu0
      %v787 = vpop.f32.mrb[0].mxu0
      %v788 = vadd.f32 %v608, %v787
      %v789 = vpop.f32.mrb[0].mxu0
      %790 = vmatprep.mubr.bf16.mxu0 0
      %791 = vmatmul.mubr.bf16.gmra.mrb[0].mxu0 %v676
      %v792 = vpop.f32.mrb[0].mxu0
      %v793 = vadd.f32 %v608, %v792
      %v794 = vpop.f32.mrb[0].mxu0
      %v795 = vpop.f32.mrb[0].mxu0
      %v796 = vadd.f32 %v608, %v795
      %v797 = vpop.f32.mrb[0].mxu0
      %798 = vmatprep.mubr.bf16.mxu0 0
      %799 = vmatmul.mubr.bf16.gmra.mrb[0].mxu0 %v679
      %v800 = vpop.f32.mrb[0].mxu0
      %v801 = vadd.f32 %v608, %v800
      %v802 = vpop.f32.mrb[0].mxu0
      %v803 = vpop.f32.mrb[0].mxu0
      %v804 = vadd.f32 %v608, %v803
      %v805 = vpop.f32.mrb[0].mxu0
      %806 = vmatprep.mubr.bf16.mxu0 0
      %807 = vmatmul.mubr.bf16.gmra.mrb[0].mxu0 %v682
      %v808 = vpop.f32.mrb[0].mxu0
      %v809 = vadd.f32 %v608, %v808
      %v810 = vpop.f32.mrb[0].mxu0
      %v811 = vpop.f32.mrb[0].mxu0
      %v812 = vadd.f32 %v608, %v811
      %v813 = vpop.f32.mrb[0].mxu0
      %814 = vmatprep.mubr.bf16.mxu0 0
      %815 = vmatmul.mubr.bf16.gmra.mrb[0].mxu0 %v685
      %v816 = vpop.f32.mrb[0].mxu0
      %v817 = vadd.f32 %v608, %v816
      %v818 = vpop.f32.mrb[0].mxu0
      %v819 = vpop.f32.mrb[0].mxu0
      %v820 = vadd.f32 %v608, %v819
      %v821 = vpop.f32.mrb[0].mxu0
      %822 = vmatprep.mubr.bf16.mxu0 0
      %823 = vmatmul.mubr.bf16.gmra.mrb[0].mxu0 %v688
      %v824 = vpop.f32.mrb[0].mxu0
      %v825 = vadd.f32 %v608, %v824
      %v826 = vpop.f32.mrb[0].mxu0
      %v827 = vpop.f32.mrb[0].mxu0
      %v828 = vadd.f32 %v608, %v827
      %v829 = vpop.f32.mrb[0].mxu0
      %830 = vmatprep.mubr.bf16.mxu0 0
      %831 = vmatmul.mubr.bf16.gmra.mrb[0].mxu0 %v691
      %v832 = vpop.f32.mrb[0].mxu0
      %v833 = vadd.f32 %v608, %v832
      %v834 = vpop.f32.mrb[0].mxu0
      %v835 = vpop.f32.mrb[0].mxu0
      %v836 = vadd.f32 %v608, %v835
      %v837 = vpop.f32.mrb[0].mxu0
      %838 = vmatprep.mubr.bf16.mxu0 0
      %839 = vmatmul.mubr.bf16.gmra.mrb[0].mxu0 %v694
      %v840 = vpop.f32.mrb[0].mxu0
      %v841 = vadd.f32 %v608, %v840
      %v842 = vpop.f32.mrb[0].mxu0
      %v843 = vpop.f32.mrb[0].mxu0
      %v844 = vadd.f32 %v608, %v843
      %v845 = vpop.f32.mrb[0].mxu0
      %846 = vmatprep.mubr.bf16.mxu0 0
      %847 = vmatmul.mubr.bf16.gmra.mrb[0].mxu0 %v697
      %v848 = vpop.f32.mrb[0].mxu0
      %v849 = vadd.f32 %v608, %v848
      %v850 = vpop.f32.mrb[0].mxu0
      %v851 = vpop.f32.mrb[0].mxu0
      %v852 = vadd.f32 %v608, %v851
      %v853 = vpop.f32.mrb[0].mxu0
      %854 = vmatprep.mubr.bf16.mxu0 0
      %855 = vmatmul.mubr.bf16.gmra.mrb[0].mxu0 %v700
      %v856 = vpop.f32.mrb[0].mxu0
      %v857 = vadd.f32 %v608, %v856
      %v858 = vpop.f32.mrb[0].mxu0
      %v859 = vpop.f32.mrb[0].mxu0
      %v860 = vadd.f32 %v608, %v859
      %v861 = vpop.f32.mrb[0].mxu0
      %862 = vdwg.mxu0
      %v863 = vtanh.pop %v737
      %v864 = vtanh.pop %v740
      %v865 = vtanh.pop %v745
      %v866 = vtanh.pop %v748
      %v867 = vtanh.pop %v753
      %v868 = vtanh.pop %v756
      %v869 = vtanh.pop %v761
      %v870 = vtanh.pop %v764
      %v871 = vtanh.pop %v769
      %v872 = vtanh.pop %v772
      %v873 = vtanh.pop %v777
      %v874 = vtanh.pop %v780
      %v875 = vtanh.pop %v785
      %v876 = vtanh.pop %v788
      %v877 = vtanh.pop %v793
      %v878 = vtanh.pop %v796
      %v879 = vtanh.pop %v801
      %v880 = vtanh.pop %v804
      %v881 = vtanh.pop %v809
      %v882 = vtanh.pop %v812
      %v883 = vtanh.pop %v817
      %v884 = vtanh.pop %v820
      %v885 = vtanh.pop %v825
      %v886 = vtanh.pop %v828
      %v887 = vtanh.pop %v833
      %v888 = vtanh.pop %v836
      %v889 = vtanh.pop %v841
      %v890 = vtanh.pop %v844
      %v891 = vtanh.pop %v849
      %v892 = vtanh.pop %v852
      %v893 = vtanh.pop %v857
      %v894 = vtanh.pop %v860
      %v895 = vpack.c.bf16 %v864, %v863
      %v896 = vpack.c.bf16 %v866, %v865
      %v897 = vpack.c.bf16 %v868, %v867
      %v898 = vpack.c.bf16 %v870, %v869
      %v899 = vpack.c.bf16 %v872, %v871
      %v900 = vpack.c.bf16 %v874, %v873
      %v901 = vpack.c.bf16 %v876, %v875
      %v902 = vpack.c.bf16 %v878, %v877
      %v903 = vpack.c.bf16 %v880, %v879
      %v904 = vpack.c.bf16 %v882, %v881
      %v905 = vpack.c.bf16 %v884, %v883
      %v906 = vpack.c.bf16 %v886, %v885
      %v907 = vpack.c.bf16 %v888, %v887
      %v908 = vpack.c.bf16 %v890, %v889
      %v909 = vpack.c.bf16 %v892, %v891
      %v910 = vpack.c.bf16 %v894, %v893
      %v927 = vunpack.c.l.b16 %v895
      %v928 = vunpack.c.h.b16 %v895
      %v929 = vunpack.c.l.b16 %v896
      %v930 = vunpack.c.h.b16 %v896
      %v931 = vunpack.c.l.b16 %v897
      %v932 = vunpack.c.h.b16 %v897
      %v933 = vunpack.c.l.b16 %v898
      %v934 = vunpack.c.h.b16 %v898
      %v935 = vunpack.c.l.b16 %v899
      %v936 = vunpack.c.h.b16 %v899
      %v937 = vunpack.c.l.b16 %v900
      %v938 = vunpack.c.h.b16 %v900
      %v939 = vunpack.c.l.b16 %v901
      %v940 = vunpack.c.h.b16 %v901
      %v941 = vunpack.c.l.b16 %v902
      %v942 = vunpack.c.h.b16 %v902
      %v943 = vunpack.c.l.b16 %v903
      %v944 = vunpack.c.h.b16 %v903
      %v945 = vunpack.c.l.b16 %v904
      %v946 = vunpack.c.h.b16 %v904
      %v947 = vunpack.c.l.b16 %v905
      %v948 = vunpack.c.h.b16 %v905
      %v949 = vunpack.c.l.b16 %v906
      %v950 = vunpack.c.h.b16 %v906
      %v951 = vunpack.c.l.b16 %v907
      %v952 = vunpack.c.h.b16 %v907
      %v953 = vunpack.c.l.b16 %v908
      %v954 = vunpack.c.h.b16 %v908
      %v955 = vunpack.c.l.b16 %v909
      %v956 = vunpack.c.h.b16 %v909
      %v957 = vunpack.c.l.b16 %v910
      %v958 = vunpack.c.h.b16 %v910
      %v959 = vpack.c.b16 %v927, %v927
      %v960 = vpack.c.b16 %v928, %v928
      %v961 = vpack.c.b16 %v929, %v929
      %v962 = vpack.c.b16 %v930, %v930
      %v963 = vpack.c.b16 %v931, %v931
      %v964 = vpack.c.b16 %v932, %v932
      %v965 = vpack.c.b16 %v933, %v933
      %v966 = vpack.c.b16 %v934, %v934
      %v967 = vpack.c.b16 %v935, %v935
      %v968 = vpack.c.b16 %v936, %v936
      %v969 = vpack.c.b16 %v937, %v937
      %v970 = vpack.c.b16 %v938, %v938
      %v971 = vpack.c.b16 %v939, %v939
      %v972 = vpack.c.b16 %v940, %v940
      %v973 = vpack.c.b16 %v941, %v941
      %v974 = vpack.c.b16 %v942, %v942
      %v975 = vpack.c.b16 %v943, %v943
      %v976 = vpack.c.b16 %v944, %v944
      %v977 = vpack.c.b16 %v945, %v945
      %v978 = vpack.c.b16 %v946, %v946
      %v979 = vpack.c.b16 %v947, %v947
      %v980 = vpack.c.b16 %v948, %v948
      %v981 = vpack.c.b16 %v949, %v949
      %v982 = vpack.c.b16 %v950, %v950
      %v983 = vpack.c.b16 %v951, %v951
      %v984 = vpack.c.b16 %v952, %v952
      %v985 = vpack.c.b16 %v953, %v953
      %v986 = vpack.c.b16 %v954, %v954
      %v987 = vpack.c.b16 %v955, %v955
      %v988 = vpack.c.b16 %v956, %v956
      %v989 = vpack.c.b16 %v957, %v957
      %v990 = vpack.c.b16 %v958, %v958
      %vm1023 = vcmask 60416
      %1024 = vst.msk [vmem:[%s280] sm:$0xf] %vm1023, %v959
      %1025 = vst.msk [vmem:[%s280 + $0x4] sm:$0xf] %vm1023, %v960
      %1026 = vst.msk [vmem:[%s280 + $0x8] sm:$0xf] %vm1023, %v961
      %1027 = vst.msk [vmem:[%s280 + $0xc] sm:$0xf] %vm1023, %v962
      %1028 = vst.msk [vmem:[%s280 + $0x10] sm:$0xf] %vm1023, %v963
      %1029 = vst.msk [vmem:[%s280 + $0x14] sm:$0xf] %vm1023, %v964
      %1030 = vst.msk [vmem:[%s280 + $0x18] sm:$0xf] %vm1023, %v965
      %1031 = vst.msk [vmem:[%s280 + $0x1c] sm:$0xf] %vm1023, %v966
      %1032 = vst.msk [vmem:[%s280 + $0x20] sm:$0xf] %vm1023, %v967
      %1033 = vst.msk [vmem:[%s280 + $0x24] sm:$0xf] %vm1023, %v968
      %1034 = vst.msk [vmem:[%s280 + $0x28] sm:$0xf] %vm1023, %v969
      %1035 = vst.msk [vmem:[%s280 + $0x2c] sm:$0xf] %vm1023, %v970
      %1036 = vst.msk [vmem:[%s280 + $0x30] sm:$0xf] %vm1023, %v971
      %1037 = vst.msk [vmem:[%s280 + $0x34] sm:$0xf] %vm1023, %v972
      %1038 = vst.msk [vmem:[%s280 + $0x38] sm:$0xf] %vm1023, %v973
      %1039 = vst.msk [vmem:[%s280 + $0x3c] sm:$0xf] %vm1023, %v974
      %1040 = vst.msk [vmem:[%s280 + $0x40] sm:$0xf] %vm1023, %v975
      %1041 = vst.msk [vmem:[%s280 + $0x44] sm:$0xf] %vm1023, %v976
      %1042 = vst.msk [vmem:[%s280 + $0x48] sm:$0xf] %vm1023, %v977
      %1043 = vst.msk [vmem:[%s280 + $0x4c] sm:$0xf] %vm1023, %v978
      %1044 = vst.msk [vmem:[%s280 + $0x50] sm:$0xf] %vm1023, %v979
      %1045 = vst.msk [vmem:[%s280 + $0x54] sm:$0xf] %vm1023, %v980
      %1046 = vst.msk [vmem:[%s280 + $0x58] sm:$0xf] %vm1023, %v981
      %1047 = vst.msk [vmem:[%s280 + $0x5c] sm:$0xf] %vm1023, %v982
      %1048 = vst.msk [vmem:[%s280 + $0x60] sm:$0xf] %vm1023, %v983
      %1049 = vst.msk [vmem:[%s280 + $0x64] sm:$0xf] %vm1023, %v984
      %1050 = vst.msk [vmem:[%s280 + $0x68] sm:$0xf] %vm1023, %v985
      %1051 = vst.msk [vmem:[%s280 + $0x6c] sm:$0xf] %vm1023, %v986
      %1052 = vst.msk [vmem:[%s280 + $0x70] sm:$0xf] %vm1023, %v987
      %1053 = vst.msk [vmem:[%s280 + $0x74] sm:$0xf] %vm1023, %v988
      %1054 = vst.msk [vmem:[%s280 + $0x78] sm:$0xf] %vm1023, %v989
      %1055 = vst.msk [vmem:[%s280 + $0x7c] sm:$0xf] %vm1023, %v990
      %s1056 = scalar_lea.vmem %s274, 256
      %v1057 = vld [vmem:[%s1056] sm:$0xff]
      %v1058 = vld [vmem:[%s1056 + $0x8] sm:$0xff]
      %v1059 = vld [vmem:[%s1056 + $0x10] sm:$0xff]
      %v1060 = vld [vmem:[%s1056 + $0x18] sm:$0xff]
      %v1061 = vld [vmem:[%s1056 + $0x20] sm:$0xff]
      %v1062 = vld [vmem:[%s1056 + $0x28] sm:$0xff]
      %v1063 = vld [vmem:[%s1056 + $0x30] sm:$0xff]
      %v1064 = vld [vmem:[%s1056 + $0x38] sm:$0xff]
      %v1065 = vld [vmem:[%s1056 + $0x40] sm:$0xff]
      %v1066 = vld [vmem:[%s1056 + $0x48] sm:$0xff]
      %v1067 = vld [vmem:[%s1056 + $0x50] sm:$0xff]
      %v1068 = vld [vmem:[%s1056 + $0x58] sm:$0xff]
      %v1069 = vld [vmem:[%s1056 + $0x60] sm:$0xff]
      %v1070 = vld [vmem:[%s1056 + $0x68] sm:$0xff]
      %v1071 = vld [vmem:[%s1056 + $0x70] sm:$0xff]
      %v1072 = vld [vmem:[%s1056 + $0x78] sm:$0xff]
      %v1073 = vld [vmem:[%s1056 + $0x80] sm:$0xff]
      %v1074 = vld [vmem:[%s1056 + $0x88] sm:$0xff]
      %v1075 = vld [vmem:[%s1056 + $0x90] sm:$0xff]
      %v1076 = vld [vmem:[%s1056 + $0x98] sm:$0xff]
      %v1077 = vld [vmem:[%s1056 + $0xa0] sm:$0xff]
      %v1078 = vld [vmem:[%s1056 + $0xa8] sm:$0xff]
      %v1079 = vld [vmem:[%s1056 + $0xb0] sm:$0xff]
      %v1080 = vld [vmem:[%s1056 + $0xb8] sm:$0xff]
      %v1081 = vld [vmem:[%s1056 + $0xc0] sm:$0xff]
      %v1082 = vld [vmem:[%s1056 + $0xc8] sm:$0xff]
      %v1083 = vld [vmem:[%s1056 + $0xd0] sm:$0xff]
      %v1084 = vld [vmem:[%s1056 + $0xd8] sm:$0xff]
      %v1085 = vld [vmem:[%s1056 + $0xe0] sm:$0xff]
      %v1086 = vld [vmem:[%s1056 + $0xe8] sm:$0xff]
      %v1087 = vld [vmem:[%s1056 + $0xf0] sm:$0xff]
      %v1088 = vld [vmem:[%s1056 + $0xf8] sm:$0xff]
      %v1089 = vpack.c.bf16 %v1058, %v1057
      %v1090 = vpack.c.bf16 %v1060, %v1059
      %v1091 = vpack.c.bf16 %v1062, %v1061
      %v1092 = vpack.c.bf16 %v1064, %v1063
      %v1093 = vpack.c.bf16 %v1066, %v1065
      %v1094 = vpack.c.bf16 %v1068, %v1067
      %v1095 = vpack.c.bf16 %v1070, %v1069
      %v1096 = vpack.c.bf16 %v1072, %v1071
      %v1097 = vpack.c.bf16 %v1074, %v1073
      %v1098 = vpack.c.bf16 %v1076, %v1075
      %v1099 = vpack.c.bf16 %v1078, %v1077
      %v1100 = vpack.c.bf16 %v1080, %v1079
      %v1101 = vpack.c.bf16 %v1082, %v1081
      %v1102 = vpack.c.bf16 %v1084, %v1083
      %v1103 = vpack.c.bf16 %v1086, %v1085
      %v1104 = vpack.c.bf16 %v1088, %v1087
      %v1106 = vsel %vm382, %v1089, 0
      %v1109 = vsel %vm382, %v1090, 0
      %v1112 = vsel %vm382, %v1091, 0
      %v1115 = vsel %vm382, %v1092, 0
      %v1118 = vsel %vm382, %v1093, 0
      %v1121 = vsel %vm382, %v1094, 0
      %v1124 = vsel %vm382, %v1095, 0
      %v1127 = vsel %vm382, %v1096, 0
      %v1130 = vsel %vm382, %v1097, 0
      %v1133 = vsel %vm382, %v1098, 0
      %v1136 = vsel %vm382, %v1099, 0
      %v1139 = vsel %vm382, %v1100, 0
      %v1142 = vsel %vm382, %v1101, 0
      %v1145 = vsel %vm382, %v1102, 0
      %v1148 = vsel %vm382, %v1103, 0
      %v1151 = vsel %vm382, %v1104, 0
      %1153 = vmatprep.subr.bf16.mxu0 0
      %1154 = vmatpush1.bf16.xpose.msra.mxu0 %v1106
      %1155 = vmatprep.subr.bf16.mxu0 0
      %1156 = vmatpush1.bf16.xpose.msra.mxu0 %v1109
      %1157 = vmatprep.subr.bf16.mxu0 0
      %1158 = vmatpush1.bf16.xpose.msra.mxu0 %v1112
      %1159 = vmatprep.subr.bf16.mxu0 0
      %1160 = vmatpush1.bf16.xpose.msra.mxu0 %v1115
      %1161 = vmatprep.subr.bf16.mxu0 0
      %1162 = vmatpush1.bf16.xpose.msra.mxu0 %v1118
      %1163 = vmatprep.subr.bf16.mxu0 0
      %1164 = vmatpush1.bf16.xpose.msra.mxu0 %v1121
      %1165 = vmatprep.subr.bf16.mxu0 0
      %1166 = vmatpush1.bf16.xpose.msra.mxu0 %v1124
      %1167 = vmatprep.subr.bf16.mxu0 0
      %1168 = vmatpush1.bf16.xpose.msra.mxu0 %v1127
      %1169 = vmatprep.subr.bf16.mxu0 0
      %1170 = vmatpush1.bf16.xpose.msra.mxu0 %v1130
      %1171 = vmatprep.subr.bf16.mxu0 0
      %1172 = vmatpush1.bf16.xpose.msra.mxu0 %v1133
      %1173 = vmatprep.subr.bf16.mxu0 0
      %1174 = vmatpush1.bf16.xpose.msra.mxu0 %v1136
      %1175 = vmatprep.subr.bf16.mxu0 0
      %1176 = vmatpush1.bf16.xpose.msra.mxu0 %v1139
      %1177 = vmatprep.subr.bf16.mxu0 0
      %1178 = vmatpush1.bf16.xpose.msra.mxu0 %v1142
      %1179 = vmatprep.subr.bf16.mxu0 0
      %1180 = vmatpush1.bf16.xpose.msra.mxu0 %v1145
      %1181 = vmatprep.subr.bf16.mxu0 0
      %1182 = vmatpush1.bf16.xpose.msra.mxu0 %v1148
      %1183 = vmatprep.subr.bf16.mxu0 0
      %1184 = vmatpush1.bf16.xpose.msra.mxu0 %v1151
      %1185 = vmatprep.mubr.bf16.mxu0 0
      %1186 = vmatmul.mubr.bf16.gmra.mrb[0].mxu0 %v384
      %v1187 = vpop.f32.mrb[0].mxu0
      %v1188 = vadd.f32 %v355, %v1187
      %v1189 = vpop.f32.mrb[0].mxu0
      %v1190 = vadd.f32 %v355, %v1189
      %v1191 = vpop.f32.mrb[0].mxu0
      %v1192 = vadd.f32 %v360, %v1191
      %v1193 = vpop.f32.mrb[0].mxu0
      %v1194 = vadd.f32 %v360, %v1193
      %1195 = vmatprep.mubr.bf16.mxu0 0
      %1196 = vmatmul.mubr.bf16.gmra.mrb[0].mxu0 %v387
      %v1197 = vpop.f32.mrb[0].mxu0
      %v1198 = vadd.f32 %v365, %v1197
      %v1199 = vpop.f32.mrb[0].mxu0
      %v1200 = vadd.f32 %v365, %v1199
      %v1201 = vpop.f32.mrb[0].mxu0
      %v1202 = vadd.f32 %v370, %v1201
      %v1203 = vpop.f32.mrb[0].mxu0
      %v1204 = vadd.f32 %v370, %v1203
      %1205 = vdwg.mxu0
      %v1206 = vmax.f32 %v1188, 0.0
      %v1207 = vmax.f32 %v1190, 0.0
      %v1208 = vmax.f32 %v1192, 0.0
      %v1209 = vmax.f32 %v1194, 0.0
      %v1210 = vmax.f32 %v1198, 0.0
      %v1211 = vmax.f32 %v1200, 0.0
      %v1212 = vmax.f32 %v1202, 0.0
      %v1213 = vmax.f32 %v1204, 0.0
      %v1214 = vpack.c.bf16 %v1208, %v1206
      %v1215 = vpack.c.bf16 %v1209, %v1207
      %v1216 = vpack.c.bf16 %v1212, %v1210
      %v1217 = vpack.c.bf16 %v1213, %v1211
      %1218 = vmatprep.subr.bf16.mxu0 %v1215
      %1219 = vmatpush1.bf16.msra.mxu0 %v1214
      %1220 = vmatprep.subr.bf16.mxu0 %v1217
      %1221 = vmatpush1.bf16.msra.mxu0 %v1216
      %1222 = vmatprep.subr.bf16.mxu0 0
      %1223 = vmatpush1.bf16.msra.mxu0 0
      %1224 = vmatprep.subr.bf16.mxu0 0
      %1225 = vmatpush1.bf16.msra.mxu0 0
      %1226 = vmatprep.subr.bf16.mxu0 0
      %1227 = vmatpush1.bf16.msra.mxu0 0
      %1228 = vmatprep.subr.bf16.mxu0 0
      %1229 = vmatpush1.bf16.msra.mxu0 0
      %1230 = vmatprep.subr.bf16.mxu0 0
      %1231 = vmatpush1.bf16.msra.mxu0 0
      %1232 = vmatprep.subr.bf16.mxu0 0
      %1233 = vmatpush1.bf16.msra.mxu0 0
      %1234 = vmatprep.subr.bf16.mxu0 0
      %1235 = vmatpush1.bf16.msra.mxu0 0
      %1236 = vmatprep.subr.bf16.mxu0 0
      %1237 = vmatpush1.bf16.msra.mxu0 0
      %1238 = vmatprep.subr.bf16.mxu0 0
      %1239 = vmatpush1.bf16.msra.mxu0 0
      %1240 = vmatprep.subr.bf16.mxu0 0
      %1241 = vmatpush1.bf16.msra.mxu0 0
      %1242 = vmatprep.subr.bf16.mxu0 0
      %1243 = vmatpush1.bf16.msra.mxu0 0
      %1244 = vmatprep.subr.bf16.mxu0 0
      %1245 = vmatpush1.bf16.msra.mxu0 0
      %1246 = vmatprep.subr.bf16.mxu0 0
      %1247 = vmatpush1.bf16.msra.mxu0 0
      %1248 = vmatprep.subr.bf16.mxu0 0
      %1249 = vmatpush1.bf16.msra.mxu0 0
      %1250 = vmatprep.mubr.bf16.mxu0 0
      %1251 = vmatmul.mubr.bf16.gmra.mrb[0].mxu0 %v534
      %v1252 = vpop.f32.mrb[0].mxu0
      %v1253 = vadd.f32 %v505, %v1252
      %v1254 = vpop.f32.mrb[0].mxu0
      %v1255 = vadd.f32 %v505, %v1254
      %v1256 = vpop.f32.mrb[0].mxu0
      %v1257 = vadd.f32 %v510, %v1256
      %v1258 = vpop.f32.mrb[0].mxu0
      %v1259 = vadd.f32 %v510, %v1258
      %1260 = vmatprep.mubr.bf16.mxu0 0
      %1261 = vmatmul.mubr.bf16.gmra.mrb[0].mxu0 %v537
      %v1262 = vpop.f32.mrb[0].mxu0
      %v1263 = vadd.f32 %v515, %v1262
      %v1264 = vpop.f32.mrb[0].mxu0
      %v1265 = vadd.f32 %v515, %v1264
      %v1266 = vpop.f32.mrb[0].mxu0
      %v1267 = vadd.f32 %v520, %v1266
      %v1268 = vpop.f32.mrb[0].mxu0
      %v1269 = vadd.f32 %v520, %v1268
      %1270 = vdwg.mxu0
      %v1271 = vmax.f32 %v1253, 0.0
      %v1272 = vmax.f32 %v1255, 0.0
      %v1273 = vmax.f32 %v1257, 0.0
      %v1274 = vmax.f32 %v1259, 0.0
      %v1275 = vmax.f32 %v1263, 0.0
      %v1276 = vmax.f32 %v1265, 0.0
      %v1277 = vmax.f32 %v1267, 0.0
      %v1278 = vmax.f32 %v1269, 0.0
      %v1279 = vpack.c.bf16 %v1273, %v1271
      %v1280 = vpack.c.bf16 %v1274, %v1272
      %v1281 = vpack.c.bf16 %v1277, %v1275
      %v1282 = vpack.c.bf16 %v1278, %v1276
      %1283 = vxpose.xlu0.c.b16.start [1/8] %v1279, 128
      %1284 = vxpose.xlu0.c.b16.cont [2/8] %v1281, 128
      %1285 = vxpose.xlu0.c.b16.cont [3/8] 0, 128
      %1286 = vxpose.xlu0.c.b16.cont [4/8] 0, 128
      %1287 = vxpose.xlu0.c.b16.cont [5/8] 0, 128
      %1288 = vxpose.xlu0.c.b16.cont [6/8] 0, 128
      %1289 = vxpose.xlu0.c.b16.cont [7/8] 0, 128
      %1290 = vxpose.xlu0.c.b16.end [8/8] 0, 128
      %v1291 = vpop.trf.xlu0
      %v1292 = vpop.trf.xlu0
      %v1293 = vpop.trf.xlu0
      %v1294 = vpop.trf.xlu0
      %v1295 = vpop.trf.xlu0
      %v1296 = vpop.trf.xlu0
      %v1297 = vpop.trf.xlu0
      %v1298 = vpop.trf.xlu0
      %1299 = vxpose.xlu0.c.b16.start [1/8] %v1280, 128
      %1300 = vxpose.xlu0.c.b16.cont [2/8] %v1282, 128
      %1301 = vxpose.xlu0.c.b16.cont [3/8] 0, 128
      %1302 = vxpose.xlu0.c.b16.cont [4/8] 0, 128
      %1303 = vxpose.xlu0.c.b16.cont [5/8] 0, 128
      %1304 = vxpose.xlu0.c.b16.cont [6/8] 0, 128
      %1305 = vxpose.xlu0.c.b16.cont [7/8] 0, 128
      %1306 = vxpose.xlu0.c.b16.end [8/8] 0, 128
      %v1307 = vpop.trf.xlu0
      %v1308 = vpop.trf.xlu0
      %v1309 = vpop.trf.xlu0
      %v1310 = vpop.trf.xlu0
      %v1311 = vpop.trf.xlu0
      %v1312 = vpop.trf.xlu0
      %v1313 = vpop.trf.xlu0
      %v1314 = vpop.trf.xlu0
      %v1316 = vsel %vm532, %v1291, 0
      %v1319 = vsel %vm532, %v1292, 0
      %v1322 = vsel %vm532, %v1293, 0
      %v1325 = vsel %vm532, %v1294, 0
      %v1328 = vsel %vm532, %v1295, 0
      %v1331 = vsel %vm532, %v1296, 0
      %v1334 = vsel %vm532, %v1297, 0
      %v1337 = vsel %vm532, %v1298, 0
      %v1340 = vsel %vm532, %v1307, 0
      %v1343 = vsel %vm532, %v1308, 0
      %v1346 = vsel %vm532, %v1309, 0
      %v1349 = vsel %vm532, %v1310, 0
      %v1352 = vsel %vm532, %v1311, 0
      %v1355 = vsel %vm532, %v1312, 0
      %v1358 = vsel %vm532, %v1313, 0
      %v1361 = vsel %vm532, %v1314, 0
      %1363 = vmatprep.subr.bf16.mxu0 0
      %1364 = vmatpush1.bf16.msra.mxu0 %v650
      %1365 = vmatprep.subr.bf16.mxu0 0
      %1366 = vmatpush1.bf16.msra.mxu0 %v651
      %1367 = vmatprep.subr.bf16.mxu0 0
      %1368 = vmatpush1.bf16.msra.mxu0 0
      %1369 = vmatprep.subr.bf16.mxu0 0
      %1370 = vmatpush1.bf16.msra.mxu0 0
      %1371 = vmatprep.subr.bf16.mxu0 0
      %1372 = vmatpush1.bf16.msra.mxu0 0
      %1373 = vmatprep.subr.bf16.mxu0 0
      %1374 = vmatpush1.bf16.msra.mxu0 0
      %1375 = vmatprep.subr.bf16.mxu0 0
      %1376 = vmatpush1.bf16.msra.mxu0 0
      %1377 = vmatprep.subr.bf16.mxu0 0
      %1378 = vmatpush1.bf16.msra.mxu0 0
      %1379 = vmatprep.subr.bf16.mxu0 0
      %1380 = vmatpush1.bf16.msra.mxu0 0
      %1381 = vmatprep.subr.bf16.mxu0 0
      %1382 = vmatpush1.bf16.msra.mxu0 0
      %1383 = vmatprep.subr.bf16.mxu0 0
      %1384 = vmatpush1.bf16.msra.mxu0 0
      %1385 = vmatprep.subr.bf16.mxu0 0
      %1386 = vmatpush1.bf16.msra.mxu0 0
      %1387 = vmatprep.subr.bf16.mxu0 0
      %1388 = vmatpush1.bf16.msra.mxu0 0
      %1389 = vmatprep.subr.bf16.mxu0 0
      %1390 = vmatpush1.bf16.msra.mxu0 0
      %1391 = vmatprep.subr.bf16.mxu0 0
      %1392 = vmatpush1.bf16.msra.mxu0 0
      %1393 = vmatprep.subr.bf16.mxu0 0
      %1394 = vmatpush1.bf16.msra.mxu0 0
      %1395 = vmatprep.mubr.bf16.mxu0 0
      %1396 = vmatmul.mubr.bf16.gmra.mrb[0].mxu0 %v1316
      %v1397 = vpop.f32.mrb[0].mxu0
      %v1398 = vadd.f32 %v608, %v1397
      %v1399 = vpop.f32.mrb[0].mxu0
      %v1400 = vpop.f32.mrb[0].mxu0
      %v1401 = vadd.f32 %v608, %v1400
      %v1402 = vpop.f32.mrb[0].mxu0
      %1403 = vmatprep.mubr.bf16.mxu0 0
      %1404 = vmatmul.mubr.bf16.gmra.mrb[0].mxu0 %v1319
      %v1405 = vpop.f32.mrb[0].mxu0
      %v1406 = vadd.f32 %v608, %v1405
      %v1407 = vpop.f32.mrb[0].mxu0
      %v1408 = vpop.f32.mrb[0].mxu0
      %v1409 = vadd.f32 %v608, %v1408
      %v1410 = vpop.f32.mrb[0].mxu0
      %1411 = vmatprep.mubr.bf16.mxu0 0
      %1412 = vmatmul.mubr.bf16.gmra.mrb[0].mxu0 %v1322
      %v1413 = vpop.f32.mrb[0].mxu0
      %v1414 = vadd.f32 %v608, %v1413
      %v1415 = vpop.f32.mrb[0].mxu0
      %v1416 = vpop.f32.mrb[0].mxu0
      %v1417 = vadd.f32 %v608, %v1416
      %v1418 = vpop.f32.mrb[0].mxu0
      %1419 = vmatprep.mubr.bf16.mxu0 0
      %1420 = vmatmul.mubr.bf16.gmra.mrb[0].mxu0 %v1325
      %v1421 = vpop.f32.mrb[0].mxu0
      %v1422 = vadd.f32 %v608, %v1421
      %v1423 = vpop.f32.mrb[0].mxu0
      %v1424 = vpop.f32.mrb[0].mxu0
      %v1425 = vadd.f32 %v608, %v1424
      %v1426 = vpop.f32.mrb[0].mxu0
      %1427 = vmatprep.mubr.bf16.mxu0 0
      %1428 = vmatmul.mubr.bf16.gmra.mrb[0].mxu0 %v1328
      %v1429 = vpop.f32.mrb[0].mxu0
      %v1430 = vadd.f32 %v608, %v1429
      %v1431 = vpop.f32.mrb[0].mxu0
      %v1432 = vpop.f32.mrb[0].mxu0
      %v1433 = vadd.f32 %v608, %v1432
      %v1434 = vpop.f32.mrb[0].mxu0
      %1435 = vmatprep.mubr.bf16.mxu0 0
      %1436 = vmatmul.mubr.bf16.gmra.mrb[0].mxu0 %v1331
      %v1437 = vpop.f32.mrb[0].mxu0
      %v1438 = vadd.f32 %v608, %v1437
      %v1439 = vpop.f32.mrb[0].mxu0
      %v1440 = vpop.f32.mrb[0].mxu0
      %v1441 = vadd.f32 %v608, %v1440
      %v1442 = vpop.f32.mrb[0].mxu0
      %1443 = vmatprep.mubr.bf16.mxu0 0
      %1444 = vmatmul.mubr.bf16.gmra.mrb[0].mxu0 %v1334
      %v1445 = vpop.f32.mrb[0].mxu0
      %v1446 = vadd.f32 %v608, %v1445
      %v1447 = vpop.f32.mrb[0].mxu0
      %v1448 = vpop.f32.mrb[0].mxu0
      %v1449 = vadd.f32 %v608, %v1448
      %v1450 = vpop.f32.mrb[0].mxu0
      %1451 = vmatprep.mubr.bf16.mxu0 0
      %1452 = vmatmul.mubr.bf16.gmra.mrb[0].mxu0 %v1337
      %v1453 = vpop.f32.mrb[0].mxu0
      %v1454 = vadd.f32 %v608, %v1453
      %v1455 = vpop.f32.mrb[0].mxu0
      %v1456 = vpop.f32.mrb[0].mxu0
      %v1457 = vadd.f32 %v608, %v1456
      %v1458 = vpop.f32.mrb[0].mxu0
      %1459 = vmatprep.mubr.bf16.mxu0 0
      %1460 = vmatmul.mubr.bf16.gmra.mrb[0].mxu0 %v1340
      %v1461 = vpop.f32.mrb[0].mxu0
      %v1462 = vadd.f32 %v608, %v1461
      %v1463 = vpop.f32.mrb[0].mxu0
      %v1464 = vpop.f32.mrb[0].mxu0
      %v1465 = vadd.f32 %v608, %v1464
      %v1466 = vpop.f32.mrb[0].mxu0
      %1467 = vmatprep.mubr.bf16.mxu0 0
      %1468 = vmatmul.mubr.bf16.gmra.mrb[0].mxu0 %v1343
      %v1469 = vpop.f32.mrb[0].mxu0
      %v1470 = vadd.f32 %v608, %v1469
      %v1471 = vpop.f32.mrb[0].mxu0
      %v1472 = vpop.f32.mrb[0].mxu0
      %v1473 = vadd.f32 %v608, %v1472
      %v1474 = vpop.f32.mrb[0].mxu0
      %1475 = vmatprep.mubr.bf16.mxu0 0
      %1476 = vmatmul.mubr.bf16.gmra.mrb[0].mxu0 %v1346
      %v1477 = vpop.f32.mrb[0].mxu0
      %v1478 = vadd.f32 %v608, %v1477
      %v1479 = vpop.f32.mrb[0].mxu0
      %v1480 = vpop.f32.mrb[0].mxu0
      %v1481 = vadd.f32 %v608, %v1480
      %v1482 = vpop.f32.mrb[0].mxu0
      %1483 = vmatprep.mubr.bf16.mxu0 0
      %1484 = vmatmul.mubr.bf16.gmra.mrb[0].mxu0 %v1349
      %v1485 = vpop.f32.mrb[0].mxu0
      %v1486 = vadd.f32 %v608, %v1485
      %v1487 = vpop.f32.mrb[0].mxu0
      %v1488 = vpop.f32.mrb[0].mxu0
      %v1489 = vadd.f32 %v608, %v1488
      %v1490 = vpop.f32.mrb[0].mxu0
      %1491 = vmatprep.mubr.bf16.mxu0 0
      %1492 = vmatmul.mubr.bf16.gmra.mrb[0].mxu0 %v1352
      %v1493 = vpop.f32.mrb[0].mxu0
      %v1494 = vadd.f32 %v608, %v1493
      %v1495 = vpop.f32.mrb[0].mxu0
      %v1496 = vpop.f32.mrb[0].mxu0
      %v1497 = vadd.f32 %v608, %v1496
      %v1498 = vpop.f32.mrb[0].mxu0
      %1499 = vmatprep.mubr.bf16.mxu0 0
      %1500 = vmatmul.mubr.bf16.gmra.mrb[0].mxu0 %v1355
      %v1501 = vpop.f32.mrb[0].mxu0
      %v1502 = vadd.f32 %v608, %v1501
      %v1503 = vpop.f32.mrb[0].mxu0
      %v1504 = vpop.f32.mrb[0].mxu0
      %v1505 = vadd.f32 %v608, %v1504
      %v1506 = vpop.f32.mrb[0].mxu0
      %1507 = vmatprep.mubr.bf16.mxu0 0
      %1508 = vmatmul.mubr.bf16.gmra.mrb[0].mxu0 %v1358
      %v1509 = vpop.f32.mrb[0].mxu0
      %v1510 = vadd.f32 %v608, %v1509
      %v1511 = vpop.f32.mrb[0].mxu0
      %v1512 = vpop.f32.mrb[0].mxu0
      %v1513 = vadd.f32 %v608, %v1512
      %v1514 = vpop.f32.mrb[0].mxu0
      %1515 = vmatprep.mubr.bf16.mxu0 0
      %1516 = vmatmul.mubr.bf16.gmra.mrb[0].mxu0 %v1361
      %v1517 = vpop.f32.mrb[0].mxu0
      %v1518 = vadd.f32 %v608, %v1517
      %v1519 = vpop.f32.mrb[0].mxu0
      %v1520 = vpop.f32.mrb[0].mxu0
      %v1521 = vadd.f32 %v608, %v1520
      %v1522 = vpop.f32.mrb[0].mxu0
      %1523 = vdwg.mxu0
      %v1524 = vtanh.pop %v1398
      %v1525 = vtanh.pop %v1401
      %v1526 = vtanh.pop %v1406
      %v1527 = vtanh.pop %v1409
      %v1528 = vtanh.pop %v1414
      %v1529 = vtanh.pop %v1417
      %v1530 = vtanh.pop %v1422
      %v1531 = vtanh.pop %v1425
      %v1532 = vtanh.pop %v1430
      %v1533 = vtanh.pop %v1433
      %v1534 = vtanh.pop %v1438
      %v1535 = vtanh.pop %v1441
      %v1536 = vtanh.pop %v1446
      %v1537 = vtanh.pop %v1449
      %v1538 = vtanh.pop %v1454
      %v1539 = vtanh.pop %v1457
      %v1540 = vtanh.pop %v1462
      %v1541 = vtanh.pop %v1465
      %v1542 = vtanh.pop %v1470
      %v1543 = vtanh.pop %v1473
      %v1544 = vtanh.pop %v1478
      %v1545 = vtanh.pop %v1481
      %v1546 = vtanh.pop %v1486
      %v1547 = vtanh.pop %v1489
      %v1548 = vtanh.pop %v1494
      %v1549 = vtanh.pop %v1497
      %v1550 = vtanh.pop %v1502
      %v1551 = vtanh.pop %v1505
      %v1552 = vtanh.pop %v1510
      %v1553 = vtanh.pop %v1513
      %v1554 = vtanh.pop %v1518
      %v1555 = vtanh.pop %v1521
      %v1556 = vpack.c.bf16 %v1525, %v1524
      %v1557 = vpack.c.bf16 %v1527, %v1526
      %v1558 = vpack.c.bf16 %v1529, %v1528
      %v1559 = vpack.c.bf16 %v1531, %v1530
      %v1560 = vpack.c.bf16 %v1533, %v1532
      %v1561 = vpack.c.bf16 %v1535, %v1534
      %v1562 = vpack.c.bf16 %v1537, %v1536
      %v1563 = vpack.c.bf16 %v1539, %v1538
      %v1564 = vpack.c.bf16 %v1541, %v1540
      %v1565 = vpack.c.bf16 %v1543, %v1542
      %v1566 = vpack.c.bf16 %v1545, %v1544
      %v1567 = vpack.c.bf16 %v1547, %v1546
      %v1568 = vpack.c.bf16 %v1549, %v1548
      %v1569 = vpack.c.bf16 %v1551, %v1550
      %v1570 = vpack.c.bf16 %v1553, %v1552
      %v1571 = vpack.c.bf16 %v1555, %v1554
      %v1588 = vunpack.c.l.b16 %v1556
      %v1589 = vunpack.c.h.b16 %v1556
      %v1590 = vunpack.c.l.b16 %v1557
      %v1591 = vunpack.c.h.b16 %v1557
      %v1592 = vunpack.c.l.b16 %v1558
      %v1593 = vunpack.c.h.b16 %v1558
      %v1594 = vunpack.c.l.b16 %v1559
      %v1595 = vunpack.c.h.b16 %v1559
      %v1596 = vunpack.c.l.b16 %v1560
      %v1597 = vunpack.c.h.b16 %v1560
      %v1598 = vunpack.c.l.b16 %v1561
      %v1599 = vunpack.c.h.b16 %v1561
      %v1600 = vunpack.c.l.b16 %v1562
      %v1601 = vunpack.c.h.b16 %v1562
      %v1602 = vunpack.c.l.b16 %v1563
      %v1603 = vunpack.c.h.b16 %v1563
      %v1604 = vunpack.c.l.b16 %v1564
      %v1605 = vunpack.c.h.b16 %v1564
      %v1606 = vunpack.c.l.b16 %v1565
      %v1607 = vunpack.c.h.b16 %v1565
      %v1608 = vunpack.c.l.b16 %v1566
      %v1609 = vunpack.c.h.b16 %v1566
      %v1610 = vunpack.c.l.b16 %v1567
      %v1611 = vunpack.c.h.b16 %v1567
      %v1612 = vunpack.c.l.b16 %v1568
      %v1613 = vunpack.c.h.b16 %v1568
      %v1614 = vunpack.c.l.b16 %v1569
      %v1615 = vunpack.c.h.b16 %v1569
      %v1616 = vunpack.c.l.b16 %v1570
      %v1617 = vunpack.c.h.b16 %v1570
      %v1618 = vunpack.c.l.b16 %v1571
      %v1619 = vunpack.c.h.b16 %v1571
      %v1620 = vpack.c.b16 %v1588, %v1588
      %v1621 = vpack.c.b16 %v1589, %v1589
      %v1622 = vpack.c.b16 %v1590, %v1590
      %v1623 = vpack.c.b16 %v1591, %v1591
      %v1624 = vpack.c.b16 %v1592, %v1592
      %v1625 = vpack.c.b16 %v1593, %v1593
      %v1626 = vpack.c.b16 %v1594, %v1594
      %v1627 = vpack.c.b16 %v1595, %v1595
      %v1628 = vpack.c.b16 %v1596, %v1596
      %v1629 = vpack.c.b16 %v1597, %v1597
      %v1630 = vpack.c.b16 %v1598, %v1598
      %v1631 = vpack.c.b16 %v1599, %v1599
      %v1632 = vpack.c.b16 %v1600, %v1600
      %v1633 = vpack.c.b16 %v1601, %v1601
      %v1634 = vpack.c.b16 %v1602, %v1602
      %v1635 = vpack.c.b16 %v1603, %v1603
      %v1636 = vpack.c.b16 %v1604, %v1604
      %v1637 = vpack.c.b16 %v1605, %v1605
      %v1638 = vpack.c.b16 %v1606, %v1606
      %v1639 = vpack.c.b16 %v1607, %v1607
      %v1640 = vpack.c.b16 %v1608, %v1608
      %v1641 = vpack.c.b16 %v1609, %v1609
      %v1642 = vpack.c.b16 %v1610, %v1610
      %v1643 = vpack.c.b16 %v1611, %v1611
      %v1644 = vpack.c.b16 %v1612, %v1612
      %v1645 = vpack.c.b16 %v1613, %v1613
      %v1646 = vpack.c.b16 %v1614, %v1614
      %v1647 = vpack.c.b16 %v1615, %v1615
      %v1648 = vpack.c.b16 %v1616, %v1616
      %v1649 = vpack.c.b16 %v1617, %v1617
      %v1650 = vpack.c.b16 %v1618, %v1618
      %v1651 = vpack.c.b16 %v1619, %v1619
      %s1684 = scalar_lea.vmem %s280, 128
      %1685 = vst.msk [vmem:[%s1684] sm:$0xf] %vm1023, %v1620
      %1686 = vst.msk [vmem:[%s1684 + $0x4] sm:$0xf] %vm1023, %v1621
      %1687 = vst.msk [vmem:[%s1684 + $0x8] sm:$0xf] %vm1023, %v1622
      %1688 = vst.msk [vmem:[%s1684 + $0xc] sm:$0xf] %vm1023, %v1623
      %1689 = vst.msk [vmem:[%s1684 + $0x10] sm:$0xf] %vm1023, %v1624
      %1690 = vst.msk [vmem:[%s1684 + $0x14] sm:$0xf] %vm1023, %v1625
      %1691 = vst.msk [vmem:[%s1684 + $0x18] sm:$0xf] %vm1023, %v1626
      %1692 = vst.msk [vmem:[%s1684 + $0x1c] sm:$0xf] %vm1023, %v1627
      %1693 = vst.msk [vmem:[%s1684 + $0x20] sm:$0xf] %vm1023, %v1628
      %1694 = vst.msk [vmem:[%s1684 + $0x24] sm:$0xf] %vm1023, %v1629
      %1695 = vst.msk [vmem:[%s1684 + $0x28] sm:$0xf] %vm1023, %v1630
      %1696 = vst.msk [vmem:[%s1684 + $0x2c] sm:$0xf] %vm1023, %v1631
      %1697 = vst.msk [vmem:[%s1684 + $0x30] sm:$0xf] %vm1023, %v1632
      %1698 = vst.msk [vmem:[%s1684 + $0x34] sm:$0xf] %vm1023, %v1633
      %1699 = vst.msk [vmem:[%s1684 + $0x38] sm:$0xf] %vm1023, %v1634
      %1700 = vst.msk [vmem:[%s1684 + $0x3c] sm:$0xf] %vm1023, %v1635
      %1701 = vst.msk [vmem:[%s1684 + $0x40] sm:$0xf] %vm1023, %v1636
      %1702 = vst.msk [vmem:[%s1684 + $0x44] sm:$0xf] %vm1023, %v1637
      %1703 = vst.msk [vmem:[%s1684 + $0x48] sm:$0xf] %vm1023, %v1638
      %1704 = vst.msk [vmem:[%s1684 + $0x4c] sm:$0xf] %vm1023, %v1639
      %1705 = vst.msk [vmem:[%s1684 + $0x50] sm:$0xf] %vm1023, %v1640
      %1706 = vst.msk [vmem:[%s1684 + $0x54] sm:$0xf] %vm1023, %v1641
      %1707 = vst.msk [vmem:[%s1684 + $0x58] sm:$0xf] %vm1023, %v1642
      %1708 = vst.msk [vmem:[%s1684 + $0x5c] sm:$0xf] %vm1023, %v1643
      %1709 = vst.msk [vmem:[%s1684 + $0x60] sm:$0xf] %vm1023, %v1644
      %1710 = vst.msk [vmem:[%s1684 + $0x64] sm:$0xf] %vm1023, %v1645
      %1711 = vst.msk [vmem:[%s1684 + $0x68] sm:$0xf] %vm1023, %v1646
      %1712 = vst.msk [vmem:[%s1684 + $0x6c] sm:$0xf] %vm1023, %v1647
      %1713 = vst.msk [vmem:[%s1684 + $0x70] sm:$0xf] %vm1023, %v1648
      %1714 = vst.msk [vmem:[%s1684 + $0x74] sm:$0xf] %vm1023, %v1649
      %1715 = vst.msk [vmem:[%s1684 + $0x78] sm:$0xf] %vm1023, %v1650
      %1716 = vst.msk [vmem:[%s1684 + $0x7c] sm:$0xf] %vm1023, %v1651
      %s1717 = smul.u32 64, %s18
      %p1718 = scmp.lt.s32.totalorder %s1717, 127
      %s1719 = scalar_select %p1718, %s1717, 127
      %s1720 = smul.addr %s1719, 4
      %s1721 = scalar_lea.vmem %s7, %s1720
      // Predicated region
      $region49: #{neural_net_forward.1} parent=47 // pred_check
        %p1722 = pneg %p188
      $region50: #{neural_net_forward.1} parent=47 // pred_check_branch
        %1724 = sbr.rel (%p1722) target = $region52
      $region51: #{neural_net_forward.1} parent=47 // pred_region
        %s1725 = smul.u32 64, %s18
      $region52: #{neural_net_forward.1} parent=47 // pred_fallthru
        _
    $region48: #{neural_net_forward.1} parent=5 // pred_fallthru
      _
    %p1726 = scmp.le.s32.totalorder 2, %s13
    // Predicated region
    $region53: #{neural_net_forward.1} parent=5 // pred_check
      %p1727 = pneg %p1726
    $region54: #{neural_net_forward.1} parent=5 // pred_check_branch
      %1729 = sbr.rel (%p1727) target = $region56
    $region55: #{neural_net_forward.1} parent=5 // pred_region
      %s1730 = ssub.s32 %s13, 2
      // Predicated region
      $region57: #{neural_net_forward.1} parent=55 // pred_check
        %p1731 = pneg %p194
      $region58: #{neural_net_forward.1} parent=55 // pred_check_branch
        %1733 = sbr.rel (%p1731) target = $region60
      $region59: #{neural_net_forward.1} parent=55 // pred_region
        %s1734 = smul.u32 64, %s19
        %p1735 = scmp.lt.s32.totalorder %s1734, 127
        %s1736 = scalar_select %p1735, %s1734, 127
        %s1737 = smul.addr %s1736, 4
        %s1738 = scalar_lea.vmem %s7, %s1737
      $region60: #{neural_net_forward.1} parent=55 // pred_fallthru
        _
    $region56: #{neural_net_forward.1} parent=5 // pred_fallthru
      _
  $region6: #{neural_net_forward.1} parent=0 // loop_footer
    %s17 = sadd.s32 1, %s13
  $region7: #{neural_net_forward.1} parent=0 // loop_footer_branch
    %12 = sbr.rel target = $region3
  $region8: #{neural_net_forward.1} parent=0 // loop_exit
    _

</llo_original>
